<compile_context>
chip_gen: v7x
topology: tpu7x:2x2x1
jax: 0.10.0
libtpu: 0.0.40
codegen_flags: <defaults>
</compile_context>

<pallas_src>
import functools

import jax
import jax.numpy as jnp
from jax.experimental import pallas as pl
from jax.experimental.pallas import tpu as pltpu


def _sigmoid(v):
    # logistic(v) = 1 / (1 + exp(-v)).
    #  * exponent clamped so the denominator stays finite (an IEEE inf would
    #    turn the Newton step into NaN); sigmoid(-60) ~ 1e-26, so no accuracy
    #    is lost by the clamp.
    #  * divide realised as EUP approximate reciprocal (free slot next to the
    #    exp) + one Newton step -> ~f32 accuracy with no VALU divide.
    d = 1.0 + jnp.exp(jnp.minimum(-v, 60.0))
    r = pl.reciprocal(d, approx=True)
    return r * (2.0 - d * r)


# ----------------------------------------------------------------------------
# Fused CBAM kernel: whole batch in one grid step, fully VMEM-resident.
# ----------------------------------------------------------------------------
def _cbam_kernel(bnt_ref, x_ref, w1_ref, b1_ref, w2_ref, b2_ref, t_ref, o_ref,
                 *, B, C, HW):
    xf = x_ref[...]                                               # (B*C, HW) f32

    # ---- ChannelGate --------------------------------------------------------
    avg = jnp.sum(xf, axis=1, keepdims=True) * (1.0 / HW)         # (B*C, 1)
    mx = jnp.max(xf, axis=1, keepdims=True)                       # (B*C, 1)
    pooled = jnp.concatenate([avg, mx], axis=1)                   # (B*C, 2)

    # Tiny per-batch MLP (hid x C) @ (C, 2); B is static so this unrolls.
    scale_rows = []
    for b in range(B):
        p_b = pooled[b * C:(b + 1) * C, :]                        # (C, 2)
        h = jnp.dot(w1_ref[...], p_b,
                    preferred_element_type=jnp.float32) + b1_ref[...]   # (hid, 2)
        h = jnp.maximum(h, 0.0)
        att = jnp.dot(w2_ref[...], h,
                      preferred_element_type=jnp.float32) + b2_ref[...]  # (C, 2)
        scale_rows.append(_sigmoid(att[:, 0:1] + att[:, 1:2]))    # (C, 1)
    scale_c = jnp.concatenate(scale_rows, axis=0)                 # (B*C, 1)

    x_cg = xf * scale_c                                           # (B*C, HW)

    # ---- SpatialGate --------------------------------------------------------
    # ChannelPool kept lane-dense: per batch, [max over C | mean over C]
    # concatenated along lanes -> one (1, 2*HW) row; stacked to (B, 2*HW).
    cpool_rows = []
    for b in range(B):
        blk = x_cg[b * C:(b + 1) * C, :]                          # (C, HW)
        cmax = jnp.max(blk, axis=0, keepdims=True)                # (1, HW)
        cmean = jnp.sum(blk, axis=0, keepdims=True) * (1.0 / C)   # (1, HW)
        cpool_rows.append(jnp.concatenate([cmax, cmean], axis=1))  # (1, 2*HW)
    cpool = jnp.concatenate(cpool_rows, axis=0)                   # (B, 2*HW)

    # 7x7 "same" conv (2->1 ch, bias-free) + folded BatchNorm as a single MXU
    # matmul against the precomputed Toeplitz matrix T; output stays lane-dense.
    conv = jnp.dot(cpool, t_ref[...],
                   preferred_element_type=jnp.float32) + bnt_ref[0]   # (B, HW)
    scale_s = _sigmoid(conv)                                      # (B, HW)

    # Final gating; per-batch stores are 64-sublane aligned and 256 lanes wide
    # (unmasked vst).
    for b in range(B):
        o_ref[b * C:(b + 1) * C, :] = (
            x_cg[b * C:(b + 1) * C, :] * scale_s[b:b + 1, :]).astype(o_ref.dtype)


# ----------------------------------------------------------------------------
# Wrapper
# ----------------------------------------------------------------------------
def cbam_forward(x, params):
    B, C, H, W = x.shape
    HW = H * W
    hid = params["w1"].shape[0]

    xf = x.reshape(B * C, HW).astype(jnp.float32)
    w1 = params["w1"].astype(jnp.float32)
    w2 = params["w2"].astype(jnp.float32)
    b1 = params["b1"].reshape(hid, 1).astype(jnp.float32)
    b2 = params["b2"].reshape(C, 1).astype(jnp.float32)

    # Fold inference-mode BatchNorm into the spatial conv: y = conv(x)*s + t.
    bn_s = params["bn_gamma"] / jnp.sqrt(params["bn_var"] + 1e-5)      # (1,)
    bn_t = (params["bn_beta"] - params["bn_mean"] * bn_s).astype(jnp.float32)

    # Precompute the 7x7 "same" conv (2->1 channels, BN gain folded) as a dense
    # (2*HW, HW) Toeplitz matrix T (512 KiB f32 at this shape), so the in-kernel
    # SpatialGate is a single lane-dense matmul. Built by pushing the identity
    # basis through the exact same conv as the reference -> no index bugs.
    w_sp_scaled = (params["w_sp"] * bn_s).astype(jnp.float32)          # (2,7,7)
    eye = jnp.eye(2 * HW, dtype=jnp.float32).reshape(2 * HW, 2, H, W)
    T = jax.lax.conv_general_dilated(
        eye, w_sp_scaled[None], window_strides=(1, 1),
        padding=((3, 3), (3, 3)),
        dimension_numbers=("NCHW", "OIHW", "NCHW")).reshape(2 * HW, HW)

    out = pl.pallas_call(
        functools.partial(_cbam_kernel, B=B, C=C, HW=HW),
        out_shape=jax.ShapeDtypeStruct((B * C, HW), jnp.float32),
        grid_spec=pltpu.PrefetchScalarGridSpec(
            num_scalar_prefetch=0,
            grid=(1,),                                            # single step
            in_specs=[
                pl.BlockSpec(memory_space=pltpu.MemorySpace.SMEM),  # bn_t
                pl.BlockSpec((B * C, HW), lambda i: (0, 0)),        # x (lane-dense)
                pl.BlockSpec((hid, C), lambda i: (0, 0)),           # w1
                pl.BlockSpec((hid, 1), lambda i: (0, 0)),           # b1
                pl.BlockSpec((C, hid), lambda i: (0, 0)),           # w2
                pl.BlockSpec((C, 1), lambda i: (0, 0)),             # b2
                pl.BlockSpec((2 * HW, HW), lambda i: (0, 0)),       # Toeplitz T
            ],
            out_specs=pl.BlockSpec((B * C, HW), lambda i: (0, 0)),
        ),
        compiler_params=pltpu.CompilerParams(
            dimension_semantics=("arbitrary",),
            vmem_limit_bytes=32 * 1024 * 1024),
    )(bn_t, xf, w1, b1, w2, b2, T)
    return out.reshape(B, C, H, W)


# ----------------------------------------------------------------------------
# Parameters (deterministic in-script init; BN = fresh BatchNorm2d, eval mode)
# ----------------------------------------------------------------------------
def init_cbam_params(key, gate_channels, reduction_ratio=16):
    hid = gate_channels // reduction_ratio
    assert hid > 0, "gate_channels must be >= reduction_ratio"
    ks = jax.random.split(key, 5)

    def uni(k, fan_in, shape):
        b = 1.0 / (fan_in ** 0.5)
        return jax.random.uniform(k, shape, jnp.float32, -b, b)

    return {
        "w1": uni(ks[0], gate_channels, (hid, gate_channels)),     # Linear(C, C//r)
        "b1": uni(ks[1], gate_channels, (hid,)),
        "w2": uni(ks[2], hid, (gate_channels, hid)),               # Linear(C//r, C)
        "b2": uni(ks[3], hid, (gate_channels,)),
        "w_sp": uni(ks[4], 2 * 7 * 7, (2, 7, 7)),                  # Conv2d(2,1,7), bias=False
        "bn_gamma": jnp.ones((1,), jnp.float32),
        "bn_beta": jnp.zeros((1,), jnp.float32),
        "bn_mean": jnp.zeros((1,), jnp.float32),
        "bn_var": jnp.ones((1,), jnp.float32),
    }


# ----------------------------------------------------------------------------
# Pure-JAX reference (mirrors the PyTorch module, eval mode) for verification
# ----------------------------------------------------------------------------
def cbam_reference(x, params):
    def mlp(p):
        h = jnp.maximum(p @ params["w1"].T + params["b1"], 0.0)
        return h @ params["w2"].T + params["b2"]

    avg = jnp.mean(x, axis=(2, 3))
    mx = jnp.max(x, axis=(2, 3))
    scale_c = jax.nn.sigmoid(mlp(avg) + mlp(mx))[:, :, None, None]
    x_cg = x * scale_c

    comp = jnp.concatenate(
        [jnp.max(x_cg, axis=1, keepdims=True),
         jnp.mean(x_cg, axis=1, keepdims=True)], axis=1)           # (B, 2, H, W)
    conv = jax.lax.conv_general_dilated(
        comp, params["w_sp"][None], window_strides=(1, 1),
        padding=((3, 3), (3, 3)),
        dimension_numbers=("NCHW", "OIHW", "NCHW"))                # (B, 1, H, W)
    bn_s = params["bn_gamma"] / jnp.sqrt(params["bn_var"] + 1e-5)
    bn_t = params["bn_beta"] - params["bn_mean"] * bn_s
    conv = conv * bn_s[None, :, None, None] + bn_t[None, :, None, None]
    return x_cg * jax.nn.sigmoid(conv)


if __name__ == "__main__":
    key = jax.random.PRNGKey(0)
    kx, kp = jax.random.split(key)

    B, C, H, W = 2, 64, 16, 16           # gate_channels=64, reduction_ratio=16
    x = jax.random.normal(kx, (B, C, H, W), dtype=jnp.float32)
    params = init_cbam_params(kp, gate_channels=C, reduction_ratio=16)

    fwd = jax.jit(cbam_forward)
    out = fwd(x, params)
    jax.block_until_ready(out)

    assert out.shape == (B, C, H, W)
    assert bool(jnp.isfinite(out).all())
    ref = cbam_reference(x, params)
    max_err = float(jnp.max(jnp.abs(out - ref)))
    # Tightened vs previous 2e-2: Newton-refined approx reciprocal keeps the
    # sigmoid ~f32-accurate, so 5e-3 is comfortably safe while still catching
    # any conv/Toeplitz indexing or layout bug (those produce O(0.1+) errors).
    assert max_err < 5e-3, f"mismatch vs reference: max abs err = {max_err}"
    print("KERNEL_OK")
</pallas_src>

<mosaic_0001>
module attributes {stable_mosaic.version = 11 : i64} {
  func.func @_cbam_kernel(%arg0: i32, %arg1: memref<1xf32, #tpu.memory_space<smem>>, %arg2: memref<128x256xf32, #tpu.memory_space<vmem>>, %arg3: memref<4x64xf32, #tpu.memory_space<vmem>>, %arg4: memref<4x1xf32, #tpu.memory_space<vmem>>, %arg5: memref<64x4xf32, #tpu.memory_space<vmem>>, %arg6: memref<64x1xf32, #tpu.memory_space<vmem>>, %arg7: memref<512x256xf32, #tpu.memory_space<vmem>>, %arg8: memref<128x256xf32, #tpu.memory_space<vmem>>) attributes {dimension_semantics = [#tpu.dimension_semantics<arbitrary>], iteration_bounds = array<i64: 1>, scalar_prefetch = 0 : i64, scratch_operands = 0 : i64, tpu.core_type = #tpu.core_type<tc>, window_params = [{transform_indices = @transform_0, window_bounds = array<i64: 1>}, {pipeline_mode = #tpu.pipeline_mode<synchronous>, transform_indices = @transform_1, window_bounds = array<i64: 128, 256>}, {pipeline_mode = #tpu.pipeline_mode<synchronous>, transform_indices = @transform_2, window_bounds = array<i64: 4, 64>}, {pipeline_mode = #tpu.pipeline_mode<synchronous>, transform_indices = @transform_3, window_bounds = array<i64: 4, 1>}, {pipeline_mode = #tpu.pipeline_mode<synchronous>, transform_indices = @transform_4, window_bounds = array<i64: 64, 4>}, {pipeline_mode = #tpu.pipeline_mode<synchronous>, transform_indices = @transform_5, window_bounds = array<i64: 64, 1>}, {pipeline_mode = #tpu.pipeline_mode<synchronous>, transform_indices = @transform_6, window_bounds = array<i64: 512, 256>}, {pipeline_mode = #tpu.pipeline_mode<synchronous>, transform_indices = @transform_7, window_bounds = array<i64: 128, 256>}]} {
    %c0 = arith.constant 0 : index
    %c0_0 = arith.constant 0 : index
    %0 = vector.load %arg2[%c0, %c0_0] : memref<128x256xf32, #tpu.memory_space<vmem>>, vector<128x256xf32>
    %cst = arith.constant dense<0.000000e+00> : vector<128xf32>
    %1 = vector.multi_reduction <add>, %0, %cst [1] : vector<128x256xf32> to vector<128xf32>
    %2 = vector.shape_cast %1 : vector<128xf32> to vector<128x1xf32>
    %cst_1 = arith.constant 3.906250e-03 : f32
    %3 = vector.broadcast %cst_1 : f32 to vector<128x1xf32>
    %4 = arith.mulf %2, %3 : vector<128x1xf32>
    %cst_2 = arith.constant dense<0xFF800000> : vector<128xf32>
    %5 = vector.multi_reduction <maximumf>, %0, %cst_2 [1] : vector<128x256xf32> to vector<128xf32>
    %6 = vector.shape_cast %5 : vector<128xf32> to vector<128x1xf32>
    %7 = tpu.concatenate %4, %6 in 1 : vector<128x1xf32>, vector<128x1xf32> -> vector<128x2xf32>
    %8 = vector.extract_strided_slice %7 {offsets = [0, 0], sizes = [64, 2], strides = [1, 1]} : vector<128x2xf32> to vector<64x2xf32>
    %c0_3 = arith.constant 0 : index
    %c0_4 = arith.constant 0 : index
    %9 = vector.load %arg3[%c0_3, %c0_4] : memref<4x64xf32, #tpu.memory_space<vmem>>, vector<4x64xf32>
    %cst_5 = arith.constant dense<0.000000e+00> : vector<4x2xf32>
    %10 = tpu.matmul %9, %8, %cst_5 {dimension_numbers = #tpu.dot_dimension_numbers<[1], [0], [0], [1], [0, 0, 1, 1], [], []>} : vector<4x64xf32>, vector<64x2xf32>, vector<4x2xf32> -> vector<4x2xf32>
    %c0_6 = arith.constant 0 : index
    %c0_7 = arith.constant 0 : index
    %11 = vector.load %arg4[%c0_6, %c0_7] : memref<4x1xf32, #tpu.memory_space<vmem>>, vector<4x1xf32>
    %12 = vector.broadcast %11 : vector<4x1xf32> to vector<4x2xf32>
    %13 = arith.addf %10, %12 : vector<4x2xf32>
    %cst_8 = arith.constant 0.000000e+00 : f32
    %14 = vector.broadcast %cst_8 : f32 to vector<4x2xf32>
    %15 = arith.maximumf %13, %14 : vector<4x2xf32>
    %c0_9 = arith.constant 0 : index
    %c0_10 = arith.constant 0 : index
    %16 = vector.load %arg5[%c0_9, %c0_10] : memref<64x4xf32, #tpu.memory_space<vmem>>, vector<64x4xf32>
    %cst_11 = arith.constant dense<0.000000e+00> : vector<64x2xf32>
    %17 = tpu.matmul %16, %15, %cst_11 {dimension_numbers = #tpu.dot_dimension_numbers<[1], [0], [0], [1], [0, 0, 1, 1], [], []>} : vector<64x4xf32>, vector<4x2xf32>, vector<64x2xf32> -> vector<64x2xf32>
    %c0_12 = arith.constant 0 : index
    %c0_13 = arith.constant 0 : index
    %18 = vector.load %arg6[%c0_12, %c0_13] : memref<64x1xf32, #tpu.memory_space<vmem>>, vector<64x1xf32>
    %19 = vector.broadcast %18 : vector<64x1xf32> to vector<64x2xf32>
    %20 = arith.addf %17, %19 : vector<64x2xf32>
    %21 = vector.extract_strided_slice %20 {offsets = [0, 0], sizes = [64, 1], strides = [1, 1]} : vector<64x2xf32> to vector<64x1xf32>
    %22 = vector.extract_strided_slice %20 {offsets = [0, 1], sizes = [64, 1], strides = [1, 1]} : vector<64x2xf32> to vector<64x1xf32>
    %23 = arith.addf %21, %22 : vector<64x1xf32>
    %cst_14 = arith.constant 0.000000e+00 : f32
    %24 = vector.broadcast %cst_14 : f32 to vector<64x1xf32>
    %25 = arith.subf %24, %23 : vector<64x1xf32>
    %cst_15 = arith.constant 6.000000e+01 : f32
    %26 = vector.broadcast %cst_15 : f32 to vector<64x1xf32>
    %27 = arith.minimumf %25, %26 : vector<64x1xf32>
    %28 = math.exp %27 : vector<64x1xf32>
    %cst_16 = arith.constant 1.000000e+00 : f32
    %29 = vector.broadcast %cst_16 : f32 to vector<64x1xf32>
    %30 = arith.addf %29, %28 : vector<64x1xf32>
    %31 = tpu.reciprocal %30 {approx = true} : vector<64x1xf32> -> vector<64x1xf32>
    %32 = arith.mulf %30, %31 : vector<64x1xf32>
    %cst_17 = arith.constant 2.000000e+00 : f32
    %33 = vector.broadcast %cst_17 : f32 to vector<64x1xf32>
    %34 = arith.subf %33, %32 : vector<64x1xf32>
    %35 = arith.mulf %31, %34 : vector<64x1xf32>
    %36 = vector.extract_strided_slice %7 {offsets = [64, 0], sizes = [64, 2], strides = [1, 1]} : vector<128x2xf32> to vector<64x2xf32>
    %c0_18 = arith.constant 0 : index
    %c0_19 = arith.constant 0 : index
    %37 = vector.load %arg3[%c0_18, %c0_19] : memref<4x64xf32, #tpu.memory_space<vmem>>, vector<4x64xf32>
    %cst_20 = arith.constant dense<0.000000e+00> : vector<4x2xf32>
    %38 = tpu.matmul %37, %36, %cst_20 {dimension_numbers = #tpu.dot_dimension_numbers<[1], [0], [0], [1], [0, 0, 1, 1], [], []>} : vector<4x64xf32>, vector<64x2xf32>, vector<4x2xf32> -> vector<4x2xf32>
    %c0_21 = arith.constant 0 : index
    %c0_22 = arith.constant 0 : index
    %39 = vector.load %arg4[%c0_21, %c0_22] : memref<4x1xf32, #tpu.memory_space<vmem>>, vector<4x1xf32>
    %40 = vector.broadcast %39 : vector<4x1xf32> to vector<4x2xf32>
    %41 = arith.addf %38, %40 : vector<4x2xf32>
    %cst_23 = arith.constant 0.000000e+00 : f32
    %42 = vector.broadcast %cst_23 : f32 to vector<4x2xf32>
    %43 = arith.maximumf %41, %42 : vector<4x2xf32>
    %c0_24 = arith.constant 0 : index
    %c0_25 = arith.constant 0 : index
    %44 = vector.load %arg5[%c0_24, %c0_25] : memref<64x4xf32, #tpu.memory_space<vmem>>, vector<64x4xf32>
    %cst_26 = arith.constant dense<0.000000e+00> : vector<64x2xf32>
    %45 = tpu.matmul %44, %43, %cst_26 {dimension_numbers = #tpu.dot_dimension_numbers<[1], [0], [0], [1], [0, 0, 1, 1], [], []>} : vector<64x4xf32>, vector<4x2xf32>, vector<64x2xf32> -> vector<64x2xf32>
    %c0_27 = arith.constant 0 : index
    %c0_28 = arith.constant 0 : index
    %46 = vector.load %arg6[%c0_27, %c0_28] : memref<64x1xf32, #tpu.memory_space<vmem>>, vector<64x1xf32>
    %47 = vector.broadcast %46 : vector<64x1xf32> to vector<64x2xf32>
    %48 = arith.addf %45, %47 : vector<64x2xf32>
    %49 = vector.extract_strided_slice %48 {offsets = [0, 0], sizes = [64, 1], strides = [1, 1]} : vector<64x2xf32> to vector<64x1xf32>
    %50 = vector.extract_strided_slice %48 {offsets = [0, 1], sizes = [64, 1], strides = [1, 1]} : vector<64x2xf32> to vector<64x1xf32>
    %51 = arith.addf %49, %50 : vector<64x1xf32>
    %cst_29 = arith.constant 0.000000e+00 : f32
    %52 = vector.broadcast %cst_29 : f32 to vector<64x1xf32>
    %53 = arith.subf %52, %51 : vector<64x1xf32>
    %cst_30 = arith.constant 6.000000e+01 : f32
    %54 = vector.broadcast %cst_30 : f32 to vector<64x1xf32>
    %55 = arith.minimumf %53, %54 : vector<64x1xf32>
    %56 = math.exp %55 : vector<64x1xf32>
    %cst_31 = arith.constant 1.000000e+00 : f32
    %57 = vector.broadcast %cst_31 : f32 to vector<64x1xf32>
    %58 = arith.addf %57, %56 : vector<64x1xf32>
    %59 = tpu.reciprocal %58 {approx = true} : vector<64x1xf32> -> vector<64x1xf32>
    %60 = arith.mulf %58, %59 : vector<64x1xf32>
    %cst_32 = arith.constant 2.000000e+00 : f32
    %61 = vector.broadcast %cst_32 : f32 to vector<64x1xf32>
    %62 = arith.subf %61, %60 : vector<64x1xf32>
    %63 = arith.mulf %59, %62 : vector<64x1xf32>
    %64 = tpu.concatenate %35, %63 in 0 : vector<64x1xf32>, vector<64x1xf32> -> vector<128x1xf32>
    %65 = vector.broadcast %64 : vector<128x1xf32> to vector<128x256xf32>
    %66 = arith.mulf %0, %65 : vector<128x256xf32>
    %67 = vector.extract_strided_slice %66 {offsets = [0, 0], sizes = [64, 256], strides = [1, 1]} : vector<128x256xf32> to vector<64x256xf32>
    %cst_33 = arith.constant dense<0xFF800000> : vector<256xf32>
    %68 = vector.multi_reduction <maximumf>, %67, %cst_33 [0] : vector<64x256xf32> to vector<256xf32>
    %69 = vector.shape_cast %68 : vector<256xf32> to vector<1x256xf32>
    %cst_34 = arith.constant dense<0.000000e+00> : vector<256xf32>
    %70 = vector.multi_reduction <add>, %67, %cst_34 [0] : vector<64x256xf32> to vector<256xf32>
    %71 = vector.shape_cast %70 : vector<256xf32> to vector<1x256xf32>
    %cst_35 = arith.constant 1.562500e-02 : f32
    %72 = vector.broadcast %cst_35 : f32 to vector<1x256xf32>
    %73 = arith.mulf %71, %72 : vector<1x256xf32>
    %74 = tpu.concatenate %69, %73 in 1 : vector<1x256xf32>, vector<1x256xf32> -> vector<1x512xf32>
    %75 = vector.extract_strided_slice %66 {offsets = [64, 0], sizes = [64, 256], strides = [1, 1]} : vector<128x256xf32> to vector<64x256xf32>
    %cst_36 = arith.constant dense<0xFF800000> : vector<256xf32>
    %76 = vector.multi_reduction <maximumf>, %75, %cst_36 [0] : vector<64x256xf32> to vector<256xf32>
    %77 = vector.shape_cast %76 : vector<256xf32> to vector<1x256xf32>
    %cst_37 = arith.constant dense<0.000000e+00> : vector<256xf32>
    %78 = vector.multi_reduction <add>, %75, %cst_37 [0] : vector<64x256xf32> to vector<256xf32>
    %79 = vector.shape_cast %78 : vector<256xf32> to vector<1x256xf32>
    %cst_38 = arith.constant 1.562500e-02 : f32
    %80 = vector.broadcast %cst_38 : f32 to vector<1x256xf32>
    %81 = arith.mulf %79, %80 : vector<1x256xf32>
    %82 = tpu.concatenate %77, %81 in 1 : vector<1x256xf32>, vector<1x256xf32> -> vector<1x512xf32>
    %83 = tpu.concatenate %74, %82 in 0 : vector<1x512xf32>, vector<1x512xf32> -> vector<2x512xf32>
    %c0_39 = arith.constant 0 : index
    %c0_40 = arith.constant 0 : index
    %84 = vector.load %arg7[%c0_39, %c0_40] : memref<512x256xf32, #tpu.memory_space<vmem>>, vector<512x256xf32>
    %cst_41 = arith.constant dense<0.000000e+00> : vector<2x256xf32>
    %85 = tpu.matmul %83, %84, %cst_41 {dimension_numbers = #tpu.dot_dimension_numbers<[1], [0], [0], [1], [0, 0, 1, 1], [], []>} : vector<2x512xf32>, vector<512x256xf32>, vector<2x256xf32> -> vector<2x256xf32>
    %c0_42 = arith.constant 0 : index
    %86 = memref.load %arg1[%c0_42] : memref<1xf32, #tpu.memory_space<smem>>
    %87 = vector.broadcast %86 : f32 to vector<2x256xf32>
    %88 = arith.addf %85, %87 : vector<2x256xf32>
    %cst_43 = arith.constant 0.000000e+00 : f32
    %89 = vector.broadcast %cst_43 : f32 to vector<2x256xf32>
    %90 = arith.subf %89, %88 : vector<2x256xf32>
    %cst_44 = arith.constant 6.000000e+01 : f32
    %91 = vector.broadcast %cst_44 : f32 to vector<2x256xf32>
    %92 = arith.minimumf %90, %91 : vector<2x256xf32>
    %93 = math.exp %92 : vector<2x256xf32>
    %cst_45 = arith.constant 1.000000e+00 : f32
    %94 = vector.broadcast %cst_45 : f32 to vector<2x256xf32>
    %95 = arith.addf %94, %93 : vector<2x256xf32>
    %96 = tpu.reciprocal %95 {approx = true} : vector<2x256xf32> -> vector<2x256xf32>
    %97 = arith.mulf %95, %96 : vector<2x256xf32>
    %cst_46 = arith.constant 2.000000e+00 : f32
    %98 = vector.broadcast %cst_46 : f32 to vector<2x256xf32>
    %99 = arith.subf %98, %97 : vector<2x256xf32>
    %100 = arith.mulf %96, %99 : vector<2x256xf32>
    %101 = vector.extract_strided_slice %66 {offsets = [0, 0], sizes = [64, 256], strides = [1, 1]} : vector<128x256xf32> to vector<64x256xf32>
    %102 = vector.extract_strided_slice %100 {offsets = [0, 0], sizes = [1, 256], strides = [1, 1]} : vector<2x256xf32> to vector<1x256xf32>
    %103 = vector.broadcast %102 : vector<1x256xf32> to vector<64x256xf32>
    %104 = arith.mulf %101, %103 : vector<64x256xf32>
    %c0_47 = arith.constant 0 : index
    %c0_48 = arith.constant 0 : index
    %105 = vector.load %arg8[%c0_47, %c0_48] : memref<128x256xf32, #tpu.memory_space<vmem>>, vector<64x256xf32>
    tpu.vector_store %arg8[%c0_47, %c0_48], %104 {strides = array<i32>} : memref<128x256xf32, #tpu.memory_space<vmem>>, vector<64x256xf32>,
    %106 = vector.extract_strided_slice %66 {offsets = [64, 0], sizes = [64, 256], strides = [1, 1]} : vector<128x256xf32> to vector<64x256xf32>
    %107 = vector.extract_strided_slice %100 {offsets = [1, 0], sizes = [1, 256], strides = [1, 1]} : vector<2x256xf32> to vector<1x256xf32>
    %108 = vector.broadcast %107 : vector<1x256xf32> to vector<64x256xf32>
    %109 = arith.mulf %106, %108 : vector<64x256xf32>
    %c64 = arith.constant 64 : index
    %c0_49 = arith.constant 0 : index
    %110 = vector.load %arg8[%c64, %c0_49] : memref<128x256xf32, #tpu.memory_space<vmem>>, vector<64x256xf32>
    tpu.vector_store %arg8[%c64, %c0_49], %109 {strides = array<i32>} : memref<128x256xf32, #tpu.memory_space<vmem>>, vector<64x256xf32>,
    return
  }
  func.func @transform_0(%arg0: i32) -> i32 {
    %c0_i32 = arith.constant 0 : i32
    %c0_i32_0 = arith.constant 0 : i32
    return %c0_i32 : i32
  }
  func.func @transform_1(%arg0: i32) -> (i32, i32) {
    %c0_i32 = arith.constant 0 : i32
    %c0_i32_0 = arith.constant 0 : i32
    %c0_i32_1 = arith.constant 0 : i32
    return %c0_i32, %c0_i32_0 : i32, i32
  }
  func.func @transform_2(%arg0: i32) -> (i32, i32) {
    %c0_i32 = arith.constant 0 : i32
    %c0_i32_0 = arith.constant 0 : i32
    %c0_i32_1 = arith.constant 0 : i32
    return %c0_i32, %c0_i32_0 : i32, i32
  }
  func.func @transform_3(%arg0: i32) -> (i32, i32) {
    %c0_i32 = arith.constant 0 : i32
    %c0_i32_0 = arith.constant 0 : i32
    %c0_i32_1 = arith.constant 0 : i32
    return %c0_i32, %c0_i32_0 : i32, i32
  }
  func.func @transform_4(%arg0: i32) -> (i32, i32) {
    %c0_i32 = arith.constant 0 : i32
    %c0_i32_0 = arith.constant 0 : i32
    %c0_i32_1 = arith.constant 0 : i32
    return %c0_i32, %c0_i32_0 : i32, i32
  }
  func.func @transform_5(%arg0: i32) -> (i32, i32) {
    %c0_i32 = arith.constant 0 : i32
    %c0_i32_0 = arith.constant 0 : i32
    %c0_i32_1 = arith.constant 0 : i32
    return %c0_i32, %c0_i32_0 : i32, i32
  }
  func.func @transform_6(%arg0: i32) -> (i32, i32) {
    %c0_i32 = arith.constant 0 : i32
    %c0_i32_0 = arith.constant 0 : i32
    %c0_i32_1 = arith.constant 0 : i32
    return %c0_i32, %c0_i32_0 : i32, i32
  }
  func.func @transform_7(%arg0: i32) -> (i32, i32) {
    %c0_i32 = arith.constant 0 : i32
    %c0_i32_0 = arith.constant 0 : i32
    %c0_i32_1 = arith.constant 0 : i32
    return %c0_i32, %c0_i32_0 : i32, i32
  }
}

</mosaic_0001>

<llo_original>
// kernel: cbam_forward.1
$region0: #{cbam_forward.1}
  #allocation0 [shape = 'u32[]', space=smem, size = 0x4, offset = 0x4, fixed_abs, tag = 'smem constant byte address 0x4 - core index']
  #allocation1 [shape = 'u32[144,128]{1,0:T(1,128)}', space=vmem, size = 0x12000, scoped, tag = 'internal scratch']
  #allocation2 [shape = 'f32[1]{0:T(128)S(6)}', space=smem, size = 0x200, scoped, tag = 'scoped memory for cbam_forward.1']
  %s0 = inlined_call_operand.<no memory space> [shape: f32[1], index: 0, kind: input, shape index: {}]
  %s1 = inlined_call_operand.vmem [shape: f32[128,256], index: 1, kind: input, shape index: {}]
  %s2 = inlined_call_operand.vmem [shape: f32[4,64], index: 2, kind: input, shape index: {}]
  %s3 = inlined_call_operand.vmem [shape: f32[4,1], index: 3, kind: input, shape index: {}]
  %s4 = inlined_call_operand.vmem [shape: f32[64,4], index: 4, kind: input, shape index: {}]
  %s5 = inlined_call_operand.vmem [shape: f32[64,1], index: 5, kind: input, shape index: {}]
  %s6 = inlined_call_operand.vmem [shape: f32[512,256], index: 6, kind: input, shape index: {}]
  %s7 = inlined_call_operand.vmem [shape: f32[128,256], index: 7, kind: output, shape index: {}]
  %s8 = sld [smem:[#allocation0]]
  $region38: #{cbam_forward.1} parent=0
    _
  %s10 = ssub.s32 1, %s8
  %s11 = scalar_select 0, %s10, %s8
  %12 = sst [smem:[#allocation2]] %s0
  // Predicated region
  $region2: #{cbam_forward.1} parent=0 // pred_check
    _
  $region3: #{cbam_forward.1} parent=0 // pred_check_branch
    %14 = sbr.rel (0) target = $region5
  $region4: #{cbam_forward.1} parent=0 // pred_region
    _
  $region5: #{cbam_forward.1} parent=0 // pred_fallthru
    _
  // Predicated region
  $region6: #{cbam_forward.1} parent=0 // pred_check
    _
  $region7: #{cbam_forward.1} parent=0 // pred_check_branch
    %16 = sbr.rel (0) target = $region9
  $region8: #{cbam_forward.1} parent=0 // pred_region
    _
  $region9: #{cbam_forward.1} parent=0 // pred_fallthru
    _
  // Predicated region
  $region10: #{cbam_forward.1} parent=0 // pred_check
    _
  $region11: #{cbam_forward.1} parent=0 // pred_check_branch
    %18 = sbr.rel (0) target = $region13
  $region12: #{cbam_forward.1} parent=0 // pred_region
    _
  $region13: #{cbam_forward.1} parent=0 // pred_fallthru
    _
  // Predicated region
  $region14: #{cbam_forward.1} parent=0 // pred_check
    _
  $region15: #{cbam_forward.1} parent=0 // pred_check_branch
    %20 = sbr.rel (0) target = $region17
  $region16: #{cbam_forward.1} parent=0 // pred_region
    _
  $region17: #{cbam_forward.1} parent=0 // pred_fallthru
    _
  // Predicated region
  $region18: #{cbam_forward.1} parent=0 // pred_check
    _
  $region19: #{cbam_forward.1} parent=0 // pred_check_branch
    %22 = sbr.rel (0) target = $region21
  $region20: #{cbam_forward.1} parent=0 // pred_region
    _
  $region21: #{cbam_forward.1} parent=0 // pred_fallthru
    _
  // Predicated region
  $region22: #{cbam_forward.1} parent=0 // pred_check
    _
  $region23: #{cbam_forward.1} parent=0 // pred_check_branch
    %24 = sbr.rel (0) target = $region25
  $region24: #{cbam_forward.1} parent=0 // pred_region
    _
  $region25: #{cbam_forward.1} parent=0 // pred_fallthru
    _
  // Predicated region
  $region26: #{cbam_forward.1} parent=0 // pred_check
    _
  $region27: #{cbam_forward.1} parent=0 // pred_check_branch
    %26 = sbr.rel (0) target = $region29
  $region28: #{cbam_forward.1} parent=0 // pred_region
    _
  $region29: #{cbam_forward.1} parent=0 // pred_fallthru
    _
  %v27 = vld [vmem:[%s1] sm:$0xff]
  %v28 = vld [vmem:[%s1 + $0x8] sm:$0xff]
  %v29 = vld [vmem:[%s1 + $0x10] sm:$0xff]
  %v30 = vld [vmem:[%s1 + $0x18] sm:$0xff]
  %v31 = vld [vmem:[%s1 + $0x20] sm:$0xff]
  %v32 = vld [vmem:[%s1 + $0x28] sm:$0xff]
  %v33 = vld [vmem:[%s1 + $0x30] sm:$0xff]
  %v34 = vld [vmem:[%s1 + $0x38] sm:$0xff]
  %v35 = vld [vmem:[%s1 + $0x40] sm:$0xff]
  %v36 = vld [vmem:[%s1 + $0x48] sm:$0xff]
  %v37 = vld [vmem:[%s1 + $0x50] sm:$0xff]
  %v38 = vld [vmem:[%s1 + $0x58] sm:$0xff]
  %v39 = vld [vmem:[%s1 + $0x60] sm:$0xff]
  %v40 = vld [vmem:[%s1 + $0x68] sm:$0xff]
  %v41 = vld [vmem:[%s1 + $0x70] sm:$0xff]
  %v42 = vld [vmem:[%s1 + $0x78] sm:$0xff]
  %v43 = vld [vmem:[%s1 + $0x80] sm:$0xff]
  %v44 = vld [vmem:[%s1 + $0x88] sm:$0xff]
  %v45 = vld [vmem:[%s1 + $0x90] sm:$0xff]
  %v46 = vld [vmem:[%s1 + $0x98] sm:$0xff]
  %v47 = vld [vmem:[%s1 + $0xa0] sm:$0xff]
  %v48 = vld [vmem:[%s1 + $0xa8] sm:$0xff]
  %v49 = vld [vmem:[%s1 + $0xb0] sm:$0xff]
  %v50 = vld [vmem:[%s1 + $0xb8] sm:$0xff]
  %v51 = vld [vmem:[%s1 + $0xc0] sm:$0xff]
  %v52 = vld [vmem:[%s1 + $0xc8] sm:$0xff]
  %v53 = vld [vmem:[%s1 + $0xd0] sm:$0xff]
  %v54 = vld [vmem:[%s1 + $0xd8] sm:$0xff]
  %v55 = vld [vmem:[%s1 + $0xe0] sm:$0xff]
  %v56 = vld [vmem:[%s1 + $0xe8] sm:$0xff]
  %v57 = vld [vmem:[%s1 + $0xf0] sm:$0xff]
  %v58 = vld [vmem:[%s1 + $0xf8] sm:$0xff]
  %v59 = vadd.f32 %v27, %v28
  %60 = vadd.xlane.f32.xlu0 %v59
  %v61 = vpop.xlane.xlu0 %60
  %v62 = vadd.f32 %v29, %v30
  %63 = vadd.xlane.f32.xlu0 %v62
  %v64 = vpop.xlane.xlu0 %63
  %v65 = vadd.f32 %v31, %v32
  %66 = vadd.xlane.f32.xlu0 %v65
  %v67 = vpop.xlane.xlu0 %66
  %v68 = vadd.f32 %v33, %v34
  %69 = vadd.xlane.f32.xlu0 %v68
  %v70 = vpop.xlane.xlu0 %69
  %v71 = vadd.f32 %v35, %v36
  %72 = vadd.xlane.f32.xlu0 %v71
  %v73 = vpop.xlane.xlu0 %72
  %v74 = vadd.f32 %v37, %v38
  %75 = vadd.xlane.f32.xlu0 %v74
  %v76 = vpop.xlane.xlu0 %75
  %v77 = vadd.f32 %v39, %v40
  %78 = vadd.xlane.f32.xlu0 %v77
  %v79 = vpop.xlane.xlu0 %78
  %v80 = vadd.f32 %v41, %v42
  %81 = vadd.xlane.f32.xlu0 %v80
  %v82 = vpop.xlane.xlu0 %81
  %v83 = vadd.f32 %v43, %v44
  %84 = vadd.xlane.f32.xlu0 %v83
  %v85 = vpop.xlane.xlu0 %84
  %v86 = vadd.f32 %v45, %v46
  %87 = vadd.xlane.f32.xlu0 %v86
  %v88 = vpop.xlane.xlu0 %87
  %v89 = vadd.f32 %v47, %v48
  %90 = vadd.xlane.f32.xlu0 %v89
  %v91 = vpop.xlane.xlu0 %90
  %v92 = vadd.f32 %v49, %v50
  %93 = vadd.xlane.f32.xlu0 %v92
  %v94 = vpop.xlane.xlu0 %93
  %v95 = vadd.f32 %v51, %v52
  %96 = vadd.xlane.f32.xlu0 %v95
  %v97 = vpop.xlane.xlu0 %96
  %v98 = vadd.f32 %v53, %v54
  %99 = vadd.xlane.f32.xlu0 %v98
  %v100 = vpop.xlane.xlu0 %99
  %v101 = vadd.f32 %v55, %v56
  %102 = vadd.xlane.f32.xlu0 %v101
  %v103 = vpop.xlane.xlu0 %102
  %v104 = vadd.f32 %v57, %v58
  %105 = vadd.xlane.f32.xlu0 %v104
  %v106 = vpop.xlane.xlu0 %105
  %v107 = vmul.f32 %v61, 0.00390625
  %v108 = vmul.f32 %v64, 0.00390625
  %v109 = vmul.f32 %v67, 0.00390625
  %v110 = vmul.f32 %v70, 0.00390625
  %v111 = vmul.f32 %v73, 0.00390625
  %v112 = vmul.f32 %v76, 0.00390625
  %v113 = vmul.f32 %v79, 0.00390625
  %v114 = vmul.f32 %v82, 0.00390625
  %v115 = vmul.f32 %v85, 0.00390625
  %v116 = vmul.f32 %v88, 0.00390625
  %v117 = vmul.f32 %v91, 0.00390625
  %v118 = vmul.f32 %v94, 0.00390625
  %v119 = vmul.f32 %v97, 0.00390625
  %v120 = vmul.f32 %v100, 0.00390625
  %v121 = vmul.f32 %v103, 0.00390625
  %v122 = vmul.f32 %v106, 0.00390625
  %v123 = vmax.f32 %v27, %v28
  %124 = vmax.xlane.f32.xlu0 %v123
  %v125 = vpop.xlane.xlu0 %124
  %v126 = vmax.f32 %v29, %v30
  %127 = vmax.xlane.f32.xlu0 %v126
  %v128 = vpop.xlane.xlu0 %127
  %v129 = vmax.f32 %v31, %v32
  %130 = vmax.xlane.f32.xlu0 %v129
  %v131 = vpop.xlane.xlu0 %130
  %v132 = vmax.f32 %v33, %v34
  %133 = vmax.xlane.f32.xlu0 %v132
  %v134 = vpop.xlane.xlu0 %133
  %v135 = vmax.f32 %v35, %v36
  %136 = vmax.xlane.f32.xlu0 %v135
  %v137 = vpop.xlane.xlu0 %136
  %v138 = vmax.f32 %v37, %v38
  %139 = vmax.xlane.f32.xlu0 %v138
  %v140 = vpop.xlane.xlu0 %139
  %v141 = vmax.f32 %v39, %v40
  %142 = vmax.xlane.f32.xlu0 %v141
  %v143 = vpop.xlane.xlu0 %142
  %v144 = vmax.f32 %v41, %v42
  %145 = vmax.xlane.f32.xlu0 %v144
  %v146 = vpop.xlane.xlu0 %145
  %v147 = vmax.f32 %v43, %v44
  %148 = vmax.xlane.f32.xlu0 %v147
  %v149 = vpop.xlane.xlu0 %148
  %v150 = vmax.f32 %v45, %v46
  %151 = vmax.xlane.f32.xlu0 %v150
  %v152 = vpop.xlane.xlu0 %151
  %v153 = vmax.f32 %v47, %v48
  %154 = vmax.xlane.f32.xlu0 %v153
  %v155 = vpop.xlane.xlu0 %154
  %v156 = vmax.f32 %v49, %v50
  %157 = vmax.xlane.f32.xlu0 %v156
  %v158 = vpop.xlane.xlu0 %157
  %v159 = vmax.f32 %v51, %v52
  %160 = vmax.xlane.f32.xlu0 %v159
  %v161 = vpop.xlane.xlu0 %160
  %v162 = vmax.f32 %v53, %v54
  %163 = vmax.xlane.f32.xlu0 %v162
  %v164 = vpop.xlane.xlu0 %163
  %v165 = vmax.f32 %v55, %v56
  %166 = vmax.xlane.f32.xlu0 %v165
  %v167 = vpop.xlane.xlu0 %166
  %v168 = vmax.f32 %v57, %v58
  %169 = vmax.xlane.f32.xlu0 %v168
  %v170 = vpop.xlane.xlu0 %169
  %vm171 = vcmask 7168
  %v172 = vsel %vm171, %v107, %v125
  %v173 = vsel %vm171, %v108, %v128
  %v174 = vsel %vm171, %v109, %v131
  %v175 = vsel %vm171, %v110, %v134
  %v176 = vsel %vm171, %v111, %v137
  %v177 = vsel %vm171, %v112, %v140
  %v178 = vsel %vm171, %v113, %v143
  %v179 = vsel %vm171, %v114, %v146
  %v180 = vsel %vm171, %v115, %v149
  %v181 = vsel %vm171, %v116, %v152
  %v182 = vsel %vm171, %v117, %v155
  %v183 = vsel %vm171, %v118, %v158
  %v184 = vsel %vm171, %v119, %v161
  %v185 = vsel %vm171, %v120, %v164
  %v186 = vsel %vm171, %v121, %v167
  %v187 = vsel %vm171, %v122, %v170
  %v188 = vld [vmem:[%s2] sm:$0xf]
  %v189 = vld [vmem:[%s3] sm:$0xf]
  %191 = vset.pattern.permute.xlu0 0
  %192 = vperm.xlu0 %191, %v189
  %v193 = vpop.permute.xlu0 %192
  %vm195 = vcmask 523264
  %v197 = vsel %vm195, %v188, 0
  %199 = vmatprep.subr.mxu0 0.0
  %200 = vmatpush1.msra.mxu0 %v172
  %201 = vmatprep.subr.mxu0 0.0
  %202 = vmatpush1.msra.mxu0 %v173
  %203 = vmatprep.subr.mxu0 0.0
  %204 = vmatpush1.msra.mxu0 %v174
  %205 = vmatprep.subr.mxu0 0.0
  %206 = vmatpush1.msra.mxu0 %v175
  %207 = vmatprep.subr.mxu0 0.0
  %208 = vmatpush1.msra.mxu0 %v176
  %209 = vmatprep.subr.mxu0 0.0
  %210 = vmatpush1.msra.mxu0 %v177
  %211 = vmatprep.subr.mxu0 0.0
  %212 = vmatpush1.msra.mxu0 %v178
  %213 = vmatprep.subr.mxu0 0.0
  %214 = vmatpush1.msra.mxu0 %v179
  %215 = vmatprep.subr.mxu0 0.0
  %216 = vmatpush1.msra.mxu0 0.0
  %217 = vmatprep.subr.mxu0 0.0
  %218 = vmatpush1.msra.mxu0 0.0
  %219 = vmatprep.subr.mxu0 0.0
  %220 = vmatpush1.msra.mxu0 0.0
  %221 = vmatprep.subr.mxu0 0.0
  %222 = vmatpush1.msra.mxu0 0.0
  %223 = vmatprep.subr.mxu0 0.0
  %224 = vmatpush1.msra.mxu0 0.0
  %225 = vmatprep.subr.mxu0 0.0
  %226 = vmatpush1.msra.mxu0 0.0
  %227 = vmatprep.subr.mxu0 0.0
  %228 = vmatpush1.msra.mxu0 0.0
  %229 = vmatprep.subr.mxu0 0.0
  %230 = vmatpush1.msra.mxu0 0.0
  %231 = vmatprep.subr.mxu0 0.0
  %232 = vmatpush1.msra.mxu0 0.0
  %233 = vmatprep.subr.mxu0 0.0
  %234 = vmatpush1.msra.mxu0 0.0
  %235 = vmatprep.subr.mxu0 0.0
  %236 = vmatpush1.msra.mxu0 0.0
  %237 = vmatprep.subr.mxu0 0.0
  %238 = vmatpush1.msra.mxu0 0.0
  %239 = vmatprep.subr.mxu0 0.0
  %240 = vmatpush1.msra.mxu0 0.0
  %241 = vmatprep.subr.mxu0 0.0
  %242 = vmatpush1.msra.mxu0 0.0
  %243 = vmatprep.subr.mxu0 0.0
  %244 = vmatpush1.msra.mxu0 0.0
  %245 = vmatprep.subr.mxu0 0.0
  %246 = vmatpush1.msra.mxu0 0.0
  %247 = vmatprep.subr.mxu0 0.0
  %248 = vmatpush1.msra.mxu0 0.0
  %249 = vmatprep.subr.mxu0 0.0
  %250 = vmatpush1.msra.mxu0 0.0
  %251 = vmatprep.subr.mxu0 0.0
  %252 = vmatpush1.msra.mxu0 0.0
  %253 = vmatprep.subr.mxu0 0.0
  %254 = vmatpush1.msra.mxu0 0.0
  %255 = vmatprep.subr.mxu0 0.0
  %256 = vmatpush1.msra.mxu0 0.0
  %257 = vmatprep.subr.mxu0 0.0
  %258 = vmatpush1.msra.mxu0 0.0
  %259 = vmatprep.subr.mxu0 0.0
  %260 = vmatpush1.msra.mxu0 0.0
  %261 = vmatprep.subr.mxu0 0.0
  %262 = vmatpush1.msra.mxu0 0.0
  %263 = vmatprep.mubr.f32.mxu0 0.0
  %264 = vmatmul.mubr.f32.gmra.mrb[0].mxu0 %v197
  %v265 = vpop.f32.mrb[0].mxu0
  %v266 = vadd.f32 %v193, %v265
  %v267 = vpop.f32.mrb[0].mxu0
  %268 = vdwg.mxu0
  %v269 = vmax.f32 %v266, 0.0
  %v270 = vld [vmem:[%s4] sm:$0xff]
  %v271 = vld [vmem:[%s4 + $0x8] sm:$0xff]
  %v272 = vld [vmem:[%s4 + $0x10] sm:$0xff]
  %v273 = vld [vmem:[%s4 + $0x18] sm:$0xff]
  %v274 = vld [vmem:[%s4 + $0x20] sm:$0xff]
  %v275 = vld [vmem:[%s4 + $0x28] sm:$0xff]
  %v276 = vld [vmem:[%s4 + $0x30] sm:$0xff]
  %v277 = vld [vmem:[%s4 + $0x38] sm:$0xff]
  %v278 = vld [vmem:[%s5] sm:$0xff]
  %v279 = vld [vmem:[%s5 + $0x8] sm:$0xff]
  %v280 = vld [vmem:[%s5 + $0x10] sm:$0xff]
  %v281 = vld [vmem:[%s5 + $0x18] sm:$0xff]
  %v282 = vld [vmem:[%s5 + $0x20] sm:$0xff]
  %v283 = vld [vmem:[%s5 + $0x28] sm:$0xff]
  %v284 = vld [vmem:[%s5 + $0x30] sm:$0xff]
  %v285 = vld [vmem:[%s5 + $0x38] sm:$0xff]
  %287 = vset.pattern.permute.xlu0 0
  %288 = vperm.xlu0 %287, %v278
  %v289 = vpop.permute.xlu0 %288
  %292 = vset.pattern.permute.xlu0 0
  %293 = vperm.xlu0 %292, %v279
  %v294 = vpop.permute.xlu0 %293
  %297 = vset.pattern.permute.xlu0 0
  %298 = vperm.xlu0 %297, %v280
  %v299 = vpop.permute.xlu0 %298
  %302 = vset.pattern.permute.xlu0 0
  %303 = vperm.xlu0 %302, %v281
  %v304 = vpop.permute.xlu0 %303
  %307 = vset.pattern.permute.xlu0 0
  %308 = vperm.xlu0 %307, %v282
  %v309 = vpop.permute.xlu0 %308
  %312 = vset.pattern.permute.xlu0 0
  %313 = vperm.xlu0 %312, %v283
  %v314 = vpop.permute.xlu0 %313
  %317 = vset.pattern.permute.xlu0 0
  %318 = vperm.xlu0 %317, %v284
  %v319 = vpop.permute.xlu0 %318
  %322 = vset.pattern.permute.xlu0 0
  %323 = vperm.xlu0 %322, %v285
  %v324 = vpop.permute.xlu0 %323
  %vm326 = vcmask 31744
  %v328 = vsel %vm326, %v270, 0
  %v331 = vsel %vm326, %v271, 0
  %v334 = vsel %vm326, %v272, 0
  %v337 = vsel %vm326, %v273, 0
  %v340 = vsel %vm326, %v274, 0
  %v343 = vsel %vm326, %v275, 0
  %v346 = vsel %vm326, %v276, 0
  %v349 = vsel %vm326, %v277, 0
  %vm351 = vcmask 1043456
  %v353 = vsel %vm351, %v269, 0
  %355 = vmatprep.subr.mxu0 0.0
  %356 = vmatpush1.msra.mxu0 %v353
  %357 = vmatprep.subr.mxu0 0.0
  %358 = vmatpush1.msra.mxu0 0.0
  %359 = vmatprep.subr.mxu0 0.0
  %360 = vmatpush1.msra.mxu0 0.0
  %361 = vmatprep.subr.mxu0 0.0
  %362 = vmatpush1.msra.mxu0 0.0
  %363 = vmatprep.subr.mxu0 0.0
  %364 = vmatpush1.msra.mxu0 0.0
  %365 = vmatprep.subr.mxu0 0.0
  %366 = vmatpush1.msra.mxu0 0.0
  %367 = vmatprep.subr.mxu0 0.0
  %368 = vmatpush1.msra.mxu0 0.0
  %369 = vmatprep.subr.mxu0 0.0
  %370 = vmatpush1.msra.mxu0 0.0
  %371 = vmatprep.subr.mxu0 0.0
  %372 = vmatpush1.msra.mxu0 0.0
  %373 = vmatprep.subr.mxu0 0.0
  %374 = vmatpush1.msra.mxu0 0.0
  %375 = vmatprep.subr.mxu0 0.0
  %376 = vmatpush1.msra.mxu0 0.0
  %377 = vmatprep.subr.mxu0 0.0
  %378 = vmatpush1.msra.mxu0 0.0
  %379 = vmatprep.subr.mxu0 0.0
  %380 = vmatpush1.msra.mxu0 0.0
  %381 = vmatprep.subr.mxu0 0.0
  %382 = vmatpush1.msra.mxu0 0.0
  %383 = vmatprep.subr.mxu0 0.0
  %384 = vmatpush1.msra.mxu0 0.0
  %385 = vmatprep.subr.mxu0 0.0
  %386 = vmatpush1.msra.mxu0 0.0
  %387 = vmatprep.subr.mxu0 0.0
  %388 = vmatpush1.msra.mxu0 0.0
  %389 = vmatprep.subr.mxu0 0.0
  %390 = vmatpush1.msra.mxu0 0.0
  %391 = vmatprep.subr.mxu0 0.0
  %392 = vmatpush1.msra.mxu0 0.0
  %393 = vmatprep.subr.mxu0 0.0
  %394 = vmatpush1.msra.mxu0 0.0
  %395 = vmatprep.subr.mxu0 0.0
  %396 = vmatpush1.msra.mxu0 0.0
  %397 = vmatprep.subr.mxu0 0.0
  %398 = vmatpush1.msra.mxu0 0.0
  %399 = vmatprep.subr.mxu0 0.0
  %400 = vmatpush1.msra.mxu0 0.0
  %401 = vmatprep.subr.mxu0 0.0
  %402 = vmatpush1.msra.mxu0 0.0
  %403 = vmatprep.subr.mxu0 0.0
  %404 = vmatpush1.msra.mxu0 0.0
  %405 = vmatprep.subr.mxu0 0.0
  %406 = vmatpush1.msra.mxu0 0.0
  %407 = vmatprep.subr.mxu0 0.0
  %408 = vmatpush1.msra.mxu0 0.0
  %409 = vmatprep.subr.mxu0 0.0
  %410 = vmatpush1.msra.mxu0 0.0
  %411 = vmatprep.subr.mxu0 0.0
  %412 = vmatpush1.msra.mxu0 0.0
  %413 = vmatprep.subr.mxu0 0.0
  %414 = vmatpush1.msra.mxu0 0.0
  %415 = vmatprep.subr.mxu0 0.0
  %416 = vmatpush1.msra.mxu0 0.0
  %417 = vmatprep.subr.mxu0 0.0
  %418 = vmatpush1.msra.mxu0 0.0
  %419 = vmatprep.mubr.f32.mxu0 0.0
  %420 = vmatmul.mubr.f32.gmra.mrb[0].mxu0 %v328
  %v421 = vpop.f32.mrb[0].mxu0
  %v422 = vadd.f32 %v289, %v421
  %v423 = vpop.f32.mrb[0].mxu0
  %424 = vmatprep.mubr.f32.mxu0 0.0
  %425 = vmatmul.mubr.f32.gmra.mrb[0].mxu0 %v331
  %v426 = vpop.f32.mrb[0].mxu0
  %v427 = vadd.f32 %v294, %v426
  %v428 = vpop.f32.mrb[0].mxu0
  %429 = vmatprep.mubr.f32.mxu0 0.0
  %430 = vmatmul.mubr.f32.gmra.mrb[0].mxu0 %v334
  %v431 = vpop.f32.mrb[0].mxu0
  %v432 = vadd.f32 %v299, %v431
  %v433 = vpop.f32.mrb[0].mxu0
  %434 = vmatprep.mubr.f32.mxu0 0.0
  %435 = vmatmul.mubr.f32.gmra.mrb[0].mxu0 %v337
  %v436 = vpop.f32.mrb[0].mxu0
  %v437 = vadd.f32 %v304, %v436
  %v438 = vpop.f32.mrb[0].mxu0
  %439 = vmatprep.mubr.f32.mxu0 0.0
  %440 = vmatmul.mubr.f32.gmra.mrb[0].mxu0 %v340
  %v441 = vpop.f32.mrb[0].mxu0
  %v442 = vadd.f32 %v309, %v441
  %v443 = vpop.f32.mrb[0].mxu0
  %444 = vmatprep.mubr.f32.mxu0 0.0
  %445 = vmatmul.mubr.f32.gmra.mrb[0].mxu0 %v343
  %v446 = vpop.f32.mrb[0].mxu0
  %v447 = vadd.f32 %v314, %v446
  %v448 = vpop.f32.mrb[0].mxu0
  %449 = vmatprep.mubr.f32.mxu0 0.0
  %450 = vmatmul.mubr.f32.gmra.mrb[0].mxu0 %v346
  %v451 = vpop.f32.mrb[0].mxu0
  %v452 = vadd.f32 %v319, %v451
  %v453 = vpop.f32.mrb[0].mxu0
  %454 = vmatprep.mubr.f32.mxu0 0.0
  %455 = vmatmul.mubr.f32.gmra.mrb[0].mxu0 %v349
  %v456 = vpop.f32.mrb[0].mxu0
  %v457 = vadd.f32 %v324, %v456
  %v458 = vpop.f32.mrb[0].mxu0
  %459 = vdwg.mxu0
  %468 = vrot.lane.b32.xlu0 %v422, 127
  %v469 = vpop.permute.xlu0 %468
  %470 = vrot.lane.b32.xlu0 %v427, 127
  %v471 = vpop.permute.xlu0 %470
  %472 = vrot.lane.b32.xlu0 %v432, 127
  %v473 = vpop.permute.xlu0 %472
  %474 = vrot.lane.b32.xlu0 %v437, 127
  %v475 = vpop.permute.xlu0 %474
  %476 = vrot.lane.b32.xlu0 %v442, 127
  %v477 = vpop.permute.xlu0 %476
  %478 = vrot.lane.b32.xlu0 %v447, 127
  %v479 = vpop.permute.xlu0 %478
  %480 = vrot.lane.b32.xlu0 %v452, 127
  %v481 = vpop.permute.xlu0 %480
  %482 = vrot.lane.b32.xlu0 %v457, 127
  %v483 = vpop.permute.xlu0 %482
  %v492 = vadd.f32 %v422, %v469
  %v493 = vadd.f32 %v427, %v471
  %v494 = vadd.f32 %v432, %v473
  %v495 = vadd.f32 %v437, %v475
  %v496 = vadd.f32 %v442, %v477
  %v497 = vadd.f32 %v447, %v479
  %v498 = vadd.f32 %v452, %v481
  %v499 = vadd.f32 %v457, %v483
  %v500 = vsub.f32 0.0, %v492
  %v501 = vsub.f32 0.0, %v493
  %v502 = vsub.f32 0.0, %v494
  %v503 = vsub.f32 0.0, %v495
  %v504 = vsub.f32 0.0, %v496
  %v505 = vsub.f32 0.0, %v497
  %v506 = vsub.f32 0.0, %v498
  %v507 = vsub.f32 0.0, %v499
  %v508 = vmin.f32 %v500, 60.0
  %v509 = vmin.f32 %v501, 60.0
  %v510 = vmin.f32 %v502, 60.0
  %v511 = vmin.f32 %v503, 60.0
  %v512 = vmin.f32 %v504, 60.0
  %v513 = vmin.f32 %v505, 60.0
  %v514 = vmin.f32 %v506, 60.0
  %v515 = vmin.f32 %v507, 60.0
  %v516 = vmul.f32 %v508, 1.442695
  %v517 = vpow.pop %v516
  %v518 = vmul.f32 %v509, 1.442695
  %v519 = vpow.pop %v518
  %v520 = vmul.f32 %v510, 1.442695
  %v521 = vpow.pop %v520
  %v522 = vmul.f32 %v511, 1.442695
  %v523 = vpow.pop %v522
  %v524 = vmul.f32 %v512, 1.442695
  %v525 = vpow.pop %v524
  %v526 = vmul.f32 %v513, 1.442695
  %v527 = vpow.pop %v526
  %v528 = vmul.f32 %v514, 1.442695
  %v529 = vpow.pop %v528
  %v530 = vmul.f32 %v515, 1.442695
  %v531 = vpow.pop %v530
  %v532 = vadd.f32 %v517, 1.0
  %v533 = vadd.f32 %v519, 1.0
  %v534 = vadd.f32 %v521, 1.0
  %v535 = vadd.f32 %v523, 1.0
  %v536 = vadd.f32 %v525, 1.0
  %v537 = vadd.f32 %v527, 1.0
  %v538 = vadd.f32 %v529, 1.0
  %v539 = vadd.f32 %v531, 1.0
  %v540 = vrcp.pop %v532
  %v541 = vrcp.pop %v533
  %v542 = vrcp.pop %v534
  %v543 = vrcp.pop %v535
  %v544 = vrcp.pop %v536
  %v545 = vrcp.pop %v537
  %v546 = vrcp.pop %v538
  %v547 = vrcp.pop %v539
  %v548 = vmul.f32 %v532, %v540
  %v549 = vmul.f32 %v533, %v541
  %v550 = vmul.f32 %v534, %v542
  %v551 = vmul.f32 %v535, %v543
  %v552 = vmul.f32 %v536, %v544
  %v553 = vmul.f32 %v537, %v545
  %v554 = vmul.f32 %v538, %v546
  %v555 = vmul.f32 %v539, %v547
  %v556 = vsub.f32 2.0, %v548
  %v557 = vsub.f32 2.0, %v549
  %v558 = vsub.f32 2.0, %v550
  %v559 = vsub.f32 2.0, %v551
  %v560 = vsub.f32 2.0, %v552
  %v561 = vsub.f32 2.0, %v553
  %v562 = vsub.f32 2.0, %v554
  %v563 = vsub.f32 2.0, %v555
  %v564 = vmul.f32 %v540, %v556
  %v565 = vmul.f32 %v541, %v557
  %v566 = vmul.f32 %v542, %v558
  %v567 = vmul.f32 %v543, %v559
  %v568 = vmul.f32 %v544, %v560
  %v569 = vmul.f32 %v545, %v561
  %v570 = vmul.f32 %v546, %v562
  %v571 = vmul.f32 %v547, %v563
  %572 = vmatprep.subr.mxu0 0.0
  %573 = vmatpush1.msra.mxu0 %v180
  %574 = vmatprep.subr.mxu0 0.0
  %575 = vmatpush1.msra.mxu0 %v181
  %576 = vmatprep.subr.mxu0 0.0
  %577 = vmatpush1.msra.mxu0 %v182
  %578 = vmatprep.subr.mxu0 0.0
  %579 = vmatpush1.msra.mxu0 %v183
  %580 = vmatprep.subr.mxu0 0.0
  %581 = vmatpush1.msra.mxu0 %v184
  %582 = vmatprep.subr.mxu0 0.0
  %583 = vmatpush1.msra.mxu0 %v185
  %584 = vmatprep.subr.mxu0 0.0
  %585 = vmatpush1.msra.mxu0 %v186
  %586 = vmatprep.subr.mxu0 0.0
  %587 = vmatpush1.msra.mxu0 %v187
  %588 = vmatprep.subr.mxu0 0.0
  %589 = vmatpush1.msra.mxu0 0.0
  %590 = vmatprep.subr.mxu0 0.0
  %591 = vmatpush1.msra.mxu0 0.0
  %592 = vmatprep.subr.mxu0 0.0
  %593 = vmatpush1.msra.mxu0 0.0
  %594 = vmatprep.subr.mxu0 0.0
  %595 = vmatpush1.msra.mxu0 0.0
  %596 = vmatprep.subr.mxu0 0.0
  %597 = vmatpush1.msra.mxu0 0.0
  %598 = vmatprep.subr.mxu0 0.0
  %599 = vmatpush1.msra.mxu0 0.0
  %600 = vmatprep.subr.mxu0 0.0
  %601 = vmatpush1.msra.mxu0 0.0
  %602 = vmatprep.subr.mxu0 0.0
  %603 = vmatpush1.msra.mxu0 0.0
  %604 = vmatprep.subr.mxu0 0.0
  %605 = vmatpush1.msra.mxu0 0.0
  %606 = vmatprep.subr.mxu0 0.0
  %607 = vmatpush1.msra.mxu0 0.0
  %608 = vmatprep.subr.mxu0 0.0
  %609 = vmatpush1.msra.mxu0 0.0
  %610 = vmatprep.subr.mxu0 0.0
  %611 = vmatpush1.msra.mxu0 0.0
  %612 = vmatprep.subr.mxu0 0.0
  %613 = vmatpush1.msra.mxu0 0.0
  %614 = vmatprep.subr.mxu0 0.0
  %615 = vmatpush1.msra.mxu0 0.0
  %616 = vmatprep.subr.mxu0 0.0
  %617 = vmatpush1.msra.mxu0 0.0
  %618 = vmatprep.subr.mxu0 0.0
  %619 = vmatpush1.msra.mxu0 0.0
  %620 = vmatprep.subr.mxu0 0.0
  %621 = vmatpush1.msra.mxu0 0.0
  %622 = vmatprep.subr.mxu0 0.0
  %623 = vmatpush1.msra.mxu0 0.0
  %624 = vmatprep.subr.mxu0 0.0
  %625 = vmatpush1.msra.mxu0 0.0
  %626 = vmatprep.subr.mxu0 0.0
  %627 = vmatpush1.msra.mxu0 0.0
  %628 = vmatprep.subr.mxu0 0.0
  %629 = vmatpush1.msra.mxu0 0.0
  %630 = vmatprep.subr.mxu0 0.0
  %631 = vmatpush1.msra.mxu0 0.0
  %632 = vmatprep.subr.mxu0 0.0
  %633 = vmatpush1.msra.mxu0 0.0
  %634 = vmatprep.subr.mxu0 0.0
  %635 = vmatpush1.msra.mxu0 0.0
  %636 = vmatprep.mubr.f32.mxu0 0.0
  %637 = vmatmul.mubr.f32.gmra.mrb[0].mxu0 %v197
  %v638 = vpop.f32.mrb[0].mxu0
  %v639 = vadd.f32 %v193, %v638
  %v640 = vpop.f32.mrb[0].mxu0
  %641 = vdwg.mxu0
  %v642 = vmax.f32 %v639, 0.0
  %v644 = vsel %vm351, %v642, 0
  %646 = vmatprep.subr.mxu0 0.0
  %647 = vmatpush1.msra.mxu0 %v644
  %648 = vmatprep.subr.mxu0 0.0
  %649 = vmatpush1.msra.mxu0 0.0
  %650 = vmatprep.subr.mxu0 0.0
  %651 = vmatpush1.msra.mxu0 0.0
  %652 = vmatprep.subr.mxu0 0.0
  %653 = vmatpush1.msra.mxu0 0.0
  %654 = vmatprep.subr.mxu0 0.0
  %655 = vmatpush1.msra.mxu0 0.0
  %656 = vmatprep.subr.mxu0 0.0
  %657 = vmatpush1.msra.mxu0 0.0
  %658 = vmatprep.subr.mxu0 0.0
  %659 = vmatpush1.msra.mxu0 0.0
  %660 = vmatprep.subr.mxu0 0.0
  %661 = vmatpush1.msra.mxu0 0.0
  %662 = vmatprep.subr.mxu0 0.0
  %663 = vmatpush1.msra.mxu0 0.0
  %664 = vmatprep.subr.mxu0 0.0
  %665 = vmatpush1.msra.mxu0 0.0
  %666 = vmatprep.subr.mxu0 0.0
  %667 = vmatpush1.msra.mxu0 0.0
  %668 = vmatprep.subr.mxu0 0.0
  %669 = vmatpush1.msra.mxu0 0.0
  %670 = vmatprep.subr.mxu0 0.0
  %671 = vmatpush1.msra.mxu0 0.0
  %672 = vmatprep.subr.mxu0 0.0
  %673 = vmatpush1.msra.mxu0 0.0
  %674 = vmatprep.subr.mxu0 0.0
  %675 = vmatpush1.msra.mxu0 0.0
  %676 = vmatprep.subr.mxu0 0.0
  %677 = vmatpush1.msra.mxu0 0.0
  %678 = vmatprep.subr.mxu0 0.0
  %679 = vmatpush1.msra.mxu0 0.0
  %680 = vmatprep.subr.mxu0 0.0
  %681 = vmatpush1.msra.mxu0 0.0
  %682 = vmatprep.subr.mxu0 0.0
  %683 = vmatpush1.msra.mxu0 0.0
  %684 = vmatprep.subr.mxu0 0.0
  %685 = vmatpush1.msra.mxu0 0.0
  %686 = vmatprep.subr.mxu0 0.0
  %687 = vmatpush1.msra.mxu0 0.0
  %688 = vmatprep.subr.mxu0 0.0
  %689 = vmatpush1.msra.mxu0 0.0
  %690 = vmatprep.subr.mxu0 0.0
  %691 = vmatpush1.msra.mxu0 0.0
  %692 = vmatprep.subr.mxu0 0.0
  %693 = vmatpush1.msra.mxu0 0.0
  %694 = vmatprep.subr.mxu0 0.0
  %695 = vmatpush1.msra.mxu0 0.0
  %696 = vmatprep.subr.mxu0 0.0
  %697 = vmatpush1.msra.mxu0 0.0
  %698 = vmatprep.subr.mxu0 0.0
  %699 = vmatpush1.msra.mxu0 0.0
  %700 = vmatprep.subr.mxu0 0.0
  %701 = vmatpush1.msra.mxu0 0.0
  %702 = vmatprep.subr.mxu0 0.0
  %703 = vmatpush1.msra.mxu0 0.0
  %704 = vmatprep.subr.mxu0 0.0
  %705 = vmatpush1.msra.mxu0 0.0
  %706 = vmatprep.subr.mxu0 0.0
  %707 = vmatpush1.msra.mxu0 0.0
  %708 = vmatprep.subr.mxu0 0.0
  %709 = vmatpush1.msra.mxu0 0.0
  %710 = vmatprep.mubr.f32.mxu0 0.0
  %711 = vmatmul.mubr.f32.gmra.mrb[0].mxu0 %v328
  %v712 = vpop.f32.mrb[0].mxu0
  %v713 = vadd.f32 %v289, %v712
  %v714 = vpop.f32.mrb[0].mxu0
  %715 = vmatprep.mubr.f32.mxu0 0.0
  %716 = vmatmul.mubr.f32.gmra.mrb[0].mxu0 %v331
  %v717 = vpop.f32.mrb[0].mxu0
  %v718 = vadd.f32 %v294, %v717
  %v719 = vpop.f32.mrb[0].mxu0
  %720 = vmatprep.mubr.f32.mxu0 0.0
  %721 = vmatmul.mubr.f32.gmra.mrb[0].mxu0 %v334
  %v722 = vpop.f32.mrb[0].mxu0
  %v723 = vadd.f32 %v299, %v722
  %v724 = vpop.f32.mrb[0].mxu0
  %725 = vmatprep.mubr.f32.mxu0 0.0
  %726 = vmatmul.mubr.f32.gmra.mrb[0].mxu0 %v337
  %v727 = vpop.f32.mrb[0].mxu0
  %v728 = vadd.f32 %v304, %v727
  %v729 = vpop.f32.mrb[0].mxu0
  %730 = vmatprep.mubr.f32.mxu0 0.0
  %731 = vmatmul.mubr.f32.gmra.mrb[0].mxu0 %v340
  %v732 = vpop.f32.mrb[0].mxu0
  %v733 = vadd.f32 %v309, %v732
  %v734 = vpop.f32.mrb[0].mxu0
  %735 = vmatprep.mubr.f32.mxu0 0.0
  %736 = vmatmul.mubr.f32.gmra.mrb[0].mxu0 %v343
  %v737 = vpop.f32.mrb[0].mxu0
  %v738 = vadd.f32 %v314, %v737
  %v739 = vpop.f32.mrb[0].mxu0
  %740 = vmatprep.mubr.f32.mxu0 0.0
  %741 = vmatmul.mubr.f32.gmra.mrb[0].mxu0 %v346
  %v742 = vpop.f32.mrb[0].mxu0
  %v743 = vadd.f32 %v319, %v742
  %v744 = vpop.f32.mrb[0].mxu0
  %745 = vmatprep.mubr.f32.mxu0 0.0
  %746 = vmatmul.mubr.f32.gmra.mrb[0].mxu0 %v349
  %v747 = vpop.f32.mrb[0].mxu0
  %v748 = vadd.f32 %v324, %v747
  %v749 = vpop.f32.mrb[0].mxu0
  %750 = vdwg.mxu0
  %759 = vrot.lane.b32.xlu0 %v713, 127
  %v760 = vpop.permute.xlu0 %759
  %761 = vrot.lane.b32.xlu0 %v718, 127
  %v762 = vpop.permute.xlu0 %761
  %763 = vrot.lane.b32.xlu0 %v723, 127
  %v764 = vpop.permute.xlu0 %763
  %765 = vrot.lane.b32.xlu0 %v728, 127
  %v766 = vpop.permute.xlu0 %765
  %767 = vrot.lane.b32.xlu0 %v733, 127
  %v768 = vpop.permute.xlu0 %767
  %769 = vrot.lane.b32.xlu0 %v738, 127
  %v770 = vpop.permute.xlu0 %769
  %771 = vrot.lane.b32.xlu0 %v743, 127
  %v772 = vpop.permute.xlu0 %771
  %773 = vrot.lane.b32.xlu0 %v748, 127
  %v774 = vpop.permute.xlu0 %773
  %v783 = vadd.f32 %v713, %v760
  %v784 = vadd.f32 %v718, %v762
  %v785 = vadd.f32 %v723, %v764
  %v786 = vadd.f32 %v728, %v766
  %v787 = vadd.f32 %v733, %v768
  %v788 = vadd.f32 %v738, %v770
  %v789 = vadd.f32 %v743, %v772
  %v790 = vadd.f32 %v748, %v774
  %v791 = vsub.f32 0.0, %v783
  %v792 = vsub.f32 0.0, %v784
  %v793 = vsub.f32 0.0, %v785
  %v794 = vsub.f32 0.0, %v786
  %v795 = vsub.f32 0.0, %v787
  %v796 = vsub.f32 0.0, %v788
  %v797 = vsub.f32 0.0, %v789
  %v798 = vsub.f32 0.0, %v790
  %v799 = vmin.f32 %v791, 60.0
  %v800 = vmin.f32 %v792, 60.0
  %v801 = vmin.f32 %v793, 60.0
  %v802 = vmin.f32 %v794, 60.0
  %v803 = vmin.f32 %v795, 60.0
  %v804 = vmin.f32 %v796, 60.0
  %v805 = vmin.f32 %v797, 60.0
  %v806 = vmin.f32 %v798, 60.0
  %v807 = vmul.f32 %v799, 1.442695
  %v808 = vpow.pop %v807
  %v809 = vmul.f32 %v800, 1.442695
  %v810 = vpow.pop %v809
  %v811 = vmul.f32 %v801, 1.442695
  %v812 = vpow.pop %v811
  %v813 = vmul.f32 %v802, 1.442695
  %v814 = vpow.pop %v813
  %v815 = vmul.f32 %v803, 1.442695
  %v816 = vpow.pop %v815
  %v817 = vmul.f32 %v804, 1.442695
  %v818 = vpow.pop %v817
  %v819 = vmul.f32 %v805, 1.442695
  %v820 = vpow.pop %v819
  %v821 = vmul.f32 %v806, 1.442695
  %v822 = vpow.pop %v821
  %v823 = vadd.f32 %v808, 1.0
  %v824 = vadd.f32 %v810, 1.0
  %v825 = vadd.f32 %v812, 1.0
  %v826 = vadd.f32 %v814, 1.0
  %v827 = vadd.f32 %v816, 1.0
  %v828 = vadd.f32 %v818, 1.0
  %v829 = vadd.f32 %v820, 1.0
  %v830 = vadd.f32 %v822, 1.0
  %v831 = vrcp.pop %v823
  %v832 = vrcp.pop %v824
  %v833 = vrcp.pop %v825
  %v834 = vrcp.pop %v826
  %v835 = vrcp.pop %v827
  %v836 = vrcp.pop %v828
  %v837 = vrcp.pop %v829
  %v838 = vrcp.pop %v830
  %v839 = vmul.f32 %v823, %v831
  %v840 = vmul.f32 %v824, %v832
  %v841 = vmul.f32 %v825, %v833
  %v842 = vmul.f32 %v826, %v834
  %v843 = vmul.f32 %v827, %v835
  %v844 = vmul.f32 %v828, %v836
  %v845 = vmul.f32 %v829, %v837
  %v846 = vmul.f32 %v830, %v838
  %v847 = vsub.f32 2.0, %v839
  %v848 = vsub.f32 2.0, %v840
  %v849 = vsub.f32 2.0, %v841
  %v850 = vsub.f32 2.0, %v842
  %v851 = vsub.f32 2.0, %v843
  %v852 = vsub.f32 2.0, %v844
  %v853 = vsub.f32 2.0, %v845
  %v854 = vsub.f32 2.0, %v846
  %v855 = vmul.f32 %v831, %v847
  %v856 = vmul.f32 %v832, %v848
  %v857 = vmul.f32 %v833, %v849
  %v858 = vmul.f32 %v834, %v850
  %v859 = vmul.f32 %v835, %v851
  %v860 = vmul.f32 %v836, %v852
  %v861 = vmul.f32 %v837, %v853
  %v862 = vmul.f32 %v838, %v854
  %864 = vset.pattern.permute.xlu0 0
  %865 = vperm.xlu0 %864, %v564
  %v866 = vpop.permute.xlu0 %865
  %869 = vset.pattern.permute.xlu0 0
  %870 = vperm.xlu0 %869, %v565
  %v871 = vpop.permute.xlu0 %870
  %874 = vset.pattern.permute.xlu0 0
  %875 = vperm.xlu0 %874, %v566
  %v876 = vpop.permute.xlu0 %875
  %879 = vset.pattern.permute.xlu0 0
  %880 = vperm.xlu0 %879, %v567
  %v881 = vpop.permute.xlu0 %880
  %884 = vset.pattern.permute.xlu0 0
  %885 = vperm.xlu0 %884, %v568
  %v886 = vpop.permute.xlu0 %885
  %889 = vset.pattern.permute.xlu0 0
  %890 = vperm.xlu0 %889, %v569
  %v891 = vpop.permute.xlu0 %890
  %894 = vset.pattern.permute.xlu0 0
  %895 = vperm.xlu0 %894, %v570
  %v896 = vpop.permute.xlu0 %895
  %899 = vset.pattern.permute.xlu0 0
  %900 = vperm.xlu0 %899, %v571
  %v901 = vpop.permute.xlu0 %900
  %904 = vset.pattern.permute.xlu0 0
  %905 = vperm.xlu0 %904, %v855
  %v906 = vpop.permute.xlu0 %905
  %909 = vset.pattern.permute.xlu0 0
  %910 = vperm.xlu0 %909, %v856
  %v911 = vpop.permute.xlu0 %910
  %914 = vset.pattern.permute.xlu0 0
  %915 = vperm.xlu0 %914, %v857
  %v916 = vpop.permute.xlu0 %915
  %919 = vset.pattern.permute.xlu0 0
  %920 = vperm.xlu0 %919, %v858
  %v921 = vpop.permute.xlu0 %920
  %924 = vset.pattern.permute.xlu0 0
  %925 = vperm.xlu0 %924, %v859
  %v926 = vpop.permute.xlu0 %925
  %929 = vset.pattern.permute.xlu0 0
  %930 = vperm.xlu0 %929, %v860
  %v931 = vpop.permute.xlu0 %930
  %934 = vset.pattern.permute.xlu0 0
  %935 = vperm.xlu0 %934, %v861
  %v936 = vpop.permute.xlu0 %935
  %939 = vset.pattern.permute.xlu0 0
  %940 = vperm.xlu0 %939, %v862
  %v941 = vpop.permute.xlu0 %940
  %v943 = vmul.f32 %v27, %v866
  %v944 = vmul.f32 %v28, %v866
  %v945 = vmul.f32 %v29, %v871
  %v946 = vmul.f32 %v30, %v871
  %v947 = vmul.f32 %v31, %v876
  %v948 = vmul.f32 %v32, %v876
  %v949 = vmul.f32 %v33, %v881
  %v950 = vmul.f32 %v34, %v881
  %v951 = vmul.f32 %v35, %v886
  %v952 = vmul.f32 %v36, %v886
  %v953 = vmul.f32 %v37, %v891
  %v954 = vmul.f32 %v38, %v891
  %v955 = vmul.f32 %v39, %v896
  %v956 = vmul.f32 %v40, %v896
  %v957 = vmul.f32 %v41, %v901
  %v958 = vmul.f32 %v42, %v901
  %v959 = vmul.f32 %v43, %v906
  %v960 = vmul.f32 %v44, %v906
  %v961 = vmul.f32 %v45, %v911
  %v962 = vmul.f32 %v46, %v911
  %v963 = vmul.f32 %v47, %v916
  %v964 = vmul.f32 %v48, %v916
  %v965 = vmul.f32 %v49, %v921
  %v966 = vmul.f32 %v50, %v921
  %v967 = vmul.f32 %v51, %v926
  %v968 = vmul.f32 %v52, %v926
  %v969 = vmul.f32 %v53, %v931
  %v970 = vmul.f32 %v54, %v931
  %v971 = vmul.f32 %v55, %v936
  %v972 = vmul.f32 %v56, %v936
  %v973 = vmul.f32 %v57, %v941
  %v974 = vmul.f32 %v58, %v941
  %v975 = vmax.f32 %v943, %v947
  %v976 = vmax.f32 %v945, %v949
  %v977 = vmax.f32 %v975, %v951
  %v978 = vmax.f32 %v976, %v953
  %v979 = vmax.f32 %v977, %v955
  %v980 = vmax.f32 %v978, %v957
  %v981 = vmax.f32 %v979, %v980
  %v982 = vrot.slane %v981, 4
  %v983 = vmax.f32 %v981, %v982
  %v984 = vrot.slane %v983, 2
  %v985 = vmax.f32 %v983, %v984
  %v986 = vrot.slane %v985, 1
  %v987 = vmax.f32 %v985, %v986
  %v988 = vmax.f32 %v944, %v948
  %v989 = vmax.f32 %v946, %v950
  %v990 = vmax.f32 %v988, %v952
  %v991 = vmax.f32 %v989, %v954
  %v992 = vmax.f32 %v990, %v956
  %v993 = vmax.f32 %v991, %v958
  %v994 = vmax.f32 %v992, %v993
  %v995 = vrot.slane %v994, 4
  %v996 = vmax.f32 %v994, %v995
  %v997 = vrot.slane %v996, 2
  %v998 = vmax.f32 %v996, %v997
  %v999 = vrot.slane %v998, 1
  %v1000 = vmax.f32 %v998, %v999
  %v1001 = vadd.f32 %v943, %v945
  %v1002 = vadd.f32 %v1001, %v947
  %v1003 = vadd.f32 %v1002, %v949
  %v1004 = vadd.f32 %v1003, %v951
  %v1005 = vadd.f32 %v1004, %v953
  %v1006 = vadd.f32 %v1005, %v955
  %v1007 = vadd.f32 %v1006, %v957
  %v1008 = vrot.slane %v1007, 4
  %v1009 = vadd.f32 %v1007, %v1008
  %v1010 = vrot.slane %v1009, 2
  %v1011 = vadd.f32 %v1009, %v1010
  %v1012 = vrot.slane %v1011, 1
  %v1013 = vadd.f32 %v1011, %v1012
  %v1014 = vadd.f32 %v944, %v946
  %v1015 = vadd.f32 %v1014, %v948
  %v1016 = vadd.f32 %v1015, %v950
  %v1017 = vadd.f32 %v1016, %v952
  %v1018 = vadd.f32 %v1017, %v954
  %v1019 = vadd.f32 %v1018, %v956
  %v1020 = vadd.f32 %v1019, %v958
  %v1021 = vrot.slane %v1020, 4
  %v1022 = vadd.f32 %v1020, %v1021
  %v1023 = vrot.slane %v1022, 2
  %v1024 = vadd.f32 %v1022, %v1023
  %v1025 = vrot.slane %v1024, 1
  %v1026 = vadd.f32 %v1024, %v1025
  %v1027 = vmul.f32 %v1013, 0.015625
  %v1028 = vmul.f32 %v1026, 0.015625
  %v1029 = vmax.f32 %v959, %v963
  %v1030 = vmax.f32 %v961, %v965
  %v1031 = vmax.f32 %v1029, %v967
  %v1032 = vmax.f32 %v1030, %v969
  %v1033 = vmax.f32 %v1031, %v971
  %v1034 = vmax.f32 %v1032, %v973
  %v1035 = vmax.f32 %v1033, %v1034
  %v1036 = vrot.slane %v1035, 4
  %v1037 = vmax.f32 %v1035, %v1036
  %v1038 = vrot.slane %v1037, 2
  %v1039 = vmax.f32 %v1037, %v1038
  %v1040 = vrot.slane %v1039, 1
  %v1041 = vmax.f32 %v1039, %v1040
  %v1042 = vmax.f32 %v960, %v964
  %v1043 = vmax.f32 %v962, %v966
  %v1044 = vmax.f32 %v1042, %v968
  %v1045 = vmax.f32 %v1043, %v970
  %v1046 = vmax.f32 %v1044, %v972
  %v1047 = vmax.f32 %v1045, %v974
  %v1048 = vmax.f32 %v1046, %v1047
  %v1049 = vrot.slane %v1048, 4
  %v1050 = vmax.f32 %v1048, %v1049
  %v1051 = vrot.slane %v1050, 2
  %v1052 = vmax.f32 %v1050, %v1051
  %v1053 = vrot.slane %v1052, 1
  %v1054 = vmax.f32 %v1052, %v1053
  %v1055 = vadd.f32 %v959, %v961
  %v1056 = vadd.f32 %v1055, %v963
  %v1057 = vadd.f32 %v1056, %v965
  %v1058 = vadd.f32 %v1057, %v967
  %v1059 = vadd.f32 %v1058, %v969
  %v1060 = vadd.f32 %v1059, %v971
  %v1061 = vadd.f32 %v1060, %v973
  %v1062 = vrot.slane %v1061, 4
  %v1063 = vadd.f32 %v1061, %v1062
  %v1064 = vrot.slane %v1063, 2
  %v1065 = vadd.f32 %v1063, %v1064
  %v1066 = vrot.slane %v1065, 1
  %v1067 = vadd.f32 %v1065, %v1066
  %v1068 = vadd.f32 %v960, %v962
  %v1069 = vadd.f32 %v1068, %v964
  %v1070 = vadd.f32 %v1069, %v966
  %v1071 = vadd.f32 %v1070, %v968
  %v1072 = vadd.f32 %v1071, %v970
  %v1073 = vadd.f32 %v1072, %v972
  %v1074 = vadd.f32 %v1073, %v974
  %v1075 = vrot.slane %v1074, 4
  %v1076 = vadd.f32 %v1074, %v1075
  %v1077 = vrot.slane %v1076, 2
  %v1078 = vadd.f32 %v1076, %v1077
  %v1079 = vrot.slane %v1078, 1
  %v1080 = vadd.f32 %v1078, %v1079
  %v1081 = vmul.f32 %v1067, 0.015625
  %v1082 = vmul.f32 %v1080, 0.015625
  %v1087 = vrot.slane %v1041, 7
  %v1088 = vrot.slane %v1054, 7
  %v1089 = vrot.slane %v1081, 7
  %v1090 = vrot.slane %v1082, 7
  %vm1095 = vcmask 1040384
  %v1096 = vsel %vm1095, %v987, %v1087
  %v1097 = vsel %vm1095, %v1000, %v1088
  %v1098 = vsel %vm1095, %v1027, %v1089
  %v1099 = vsel %vm1095, %v1028, %v1090
  %v1100 = vld [vmem:[%s6] sm:$0xff]
  %v1101 = vld [vmem:[%s6 + $0x8] sm:$0xff]
  %v1102 = vld [vmem:[%s6 + $0x10] sm:$0xff]
  %v1103 = vld [vmem:[%s6 + $0x18] sm:$0xff]
  %v1104 = vld [vmem:[%s6 + $0x20] sm:$0xff]
  %v1105 = vld [vmem:[%s6 + $0x28] sm:$0xff]
  %v1106 = vld [vmem:[%s6 + $0x30] sm:$0xff]
  %v1107 = vld [vmem:[%s6 + $0x38] sm:$0xff]
  %v1108 = vld [vmem:[%s6 + $0x40] sm:$0xff]
  %v1109 = vld [vmem:[%s6 + $0x48] sm:$0xff]
  %v1110 = vld [vmem:[%s6 + $0x50] sm:$0xff]
  %v1111 = vld [vmem:[%s6 + $0x58] sm:$0xff]
  %v1112 = vld [vmem:[%s6 + $0x60] sm:$0xff]
  %v1113 = vld [vmem:[%s6 + $0x68] sm:$0xff]
  %v1114 = vld [vmem:[%s6 + $0x70] sm:$0xff]
  %v1115 = vld [vmem:[%s6 + $0x78] sm:$0xff]
  %v1116 = vld [vmem:[%s6 + $0x80] sm:$0xff]
  %v1117 = vld [vmem:[%s6 + $0x88] sm:$0xff]
  %v1118 = vld [vmem:[%s6 + $0x90] sm:$0xff]
  %v1119 = vld [vmem:[%s6 + $0x98] sm:$0xff]
  %v1120 = vld [vmem:[%s6 + $0xa0] sm:$0xff]
  %v1121 = vld [vmem:[%s6 + $0xa8] sm:$0xff]
  %v1122 = vld [vmem:[%s6 + $0xb0] sm:$0xff]
  %v1123 = vld [vmem:[%s6 + $0xb8] sm:$0xff]
  %v1124 = vld [vmem:[%s6 + $0xc0] sm:$0xff]
  %v1125 = vld [vmem:[%s6 + $0xc8] sm:$0xff]
  %v1126 = vld [vmem:[%s6 + $0xd0] sm:$0xff]
  %v1127 = vld [vmem:[%s6 + $0xd8] sm:$0xff]
  %v1128 = vld [vmem:[%s6 + $0xe0] sm:$0xff]
  %v1129 = vld [vmem:[%s6 + $0xe8] sm:$0xff]
  %v1130 = vld [vmem:[%s6 + $0xf0] sm:$0xff]
  %v1131 = vld [vmem:[%s6 + $0xf8] sm:$0xff]
  %v1132 = vld [vmem:[%s6 + $0x100] sm:$0xff]
  %v1133 = vld [vmem:[%s6 + $0x108] sm:$0xff]
  %v1134 = vld [vmem:[%s6 + $0x110] sm:$0xff]
  %v1135 = vld [vmem:[%s6 + $0x118] sm:$0xff]
  %v1136 = vld [vmem:[%s6 + $0x120] sm:$0xff]
  %v1137 = vld [vmem:[%s6 + $0x128] sm:$0xff]
  %v1138 = vld [vmem:[%s6 + $0x130] sm:$0xff]
  %v1139 = vld [vmem:[%s6 + $0x138] sm:$0xff]
  %v1140 = vld [vmem:[%s6 + $0x140] sm:$0xff]
  %v1141 = vld [vmem:[%s6 + $0x148] sm:$0xff]
  %v1142 = vld [vmem:[%s6 + $0x150] sm:$0xff]
  %v1143 = vld [vmem:[%s6 + $0x158] sm:$0xff]
  %v1144 = vld [vmem:[%s6 + $0x160] sm:$0xff]
  %v1145 = vld [vmem:[%s6 + $0x168] sm:$0xff]
  %v1146 = vld [vmem:[%s6 + $0x170] sm:$0xff]
  %v1147 = vld [vmem:[%s6 + $0x178] sm:$0xff]
  %v1148 = vld [vmem:[%s6 + $0x180] sm:$0xff]
  %v1149 = vld [vmem:[%s6 + $0x188] sm:$0xff]
  %v1150 = vld [vmem:[%s6 + $0x190] sm:$0xff]
  %v1151 = vld [vmem:[%s6 + $0x198] sm:$0xff]
  %v1152 = vld [vmem:[%s6 + $0x1a0] sm:$0xff]
  %v1153 = vld [vmem:[%s6 + $0x1a8] sm:$0xff]
  %v1154 = vld [vmem:[%s6 + $0x1b0] sm:$0xff]
  %v1155 = vld [vmem:[%s6 + $0x1b8] sm:$0xff]
  %v1156 = vld [vmem:[%s6 + $0x1c0] sm:$0xff]
  %v1157 = vld [vmem:[%s6 + $0x1c8] sm:$0xff]
  %v1158 = vld [vmem:[%s6 + $0x1d0] sm:$0xff]
  %v1159 = vld [vmem:[%s6 + $0x1d8] sm:$0xff]
  %v1160 = vld [vmem:[%s6 + $0x1e0] sm:$0xff]
  %v1161 = vld [vmem:[%s6 + $0x1e8] sm:$0xff]
  %v1162 = vld [vmem:[%s6 + $0x1f0] sm:$0xff]
  %v1163 = vld [vmem:[%s6 + $0x1f8] sm:$0xff]
  %v1164 = vld [vmem:[%s6 + $0x200] sm:$0xff]
  %v1165 = vld [vmem:[%s6 + $0x208] sm:$0xff]
  %v1166 = vld [vmem:[%s6 + $0x210] sm:$0xff]
  %v1167 = vld [vmem:[%s6 + $0x218] sm:$0xff]
  %v1168 = vld [vmem:[%s6 + $0x220] sm:$0xff]
  %v1169 = vld [vmem:[%s6 + $0x228] sm:$0xff]
  %v1170 = vld [vmem:[%s6 + $0x230] sm:$0xff]
  %v1171 = vld [vmem:[%s6 + $0x238] sm:$0xff]
  %v1172 = vld [vmem:[%s6 + $0x240] sm:$0xff]
  %v1173 = vld [vmem:[%s6 + $0x248] sm:$0xff]
  %v1174 = vld [vmem:[%s6 + $0x250] sm:$0xff]
  %v1175 = vld [vmem:[%s6 + $0x258] sm:$0xff]
  %v1176 = vld [vmem:[%s6 + $0x260] sm:$0xff]
  %v1177 = vld [vmem:[%s6 + $0x268] sm:$0xff]
  %v1178 = vld [vmem:[%s6 + $0x270] sm:$0xff]
  %v1179 = vld [vmem:[%s6 + $0x278] sm:$0xff]
  %v1180 = vld [vmem:[%s6 + $0x280] sm:$0xff]
  %v1181 = vld [vmem:[%s6 + $0x288] sm:$0xff]
  %v1182 = vld [vmem:[%s6 + $0x290] sm:$0xff]
  %v1183 = vld [vmem:[%s6 + $0x298] sm:$0xff]
  %v1184 = vld [vmem:[%s6 + $0x2a0] sm:$0xff]
  %v1185 = vld [vmem:[%s6 + $0x2a8] sm:$0xff]
  %v1186 = vld [vmem:[%s6 + $0x2b0] sm:$0xff]
  %v1187 = vld [vmem:[%s6 + $0x2b8] sm:$0xff]
  %v1188 = vld [vmem:[%s6 + $0x2c0] sm:$0xff]
  %v1189 = vld [vmem:[%s6 + $0x2c8] sm:$0xff]
  %v1190 = vld [vmem:[%s6 + $0x2d0] sm:$0xff]
  %v1191 = vld [vmem:[%s6 + $0x2d8] sm:$0xff]
  %v1192 = vld [vmem:[%s6 + $0x2e0] sm:$0xff]
  %v1193 = vld [vmem:[%s6 + $0x2e8] sm:$0xff]
  %v1194 = vld [vmem:[%s6 + $0x2f0] sm:$0xff]
  %v1195 = vld [vmem:[%s6 + $0x2f8] sm:$0xff]
  %v1196 = vld [vmem:[%s6 + $0x300] sm:$0xff]
  %v1197 = vld [vmem:[%s6 + $0x308] sm:$0xff]
  %v1198 = vld [vmem:[%s6 + $0x310] sm:$0xff]
  %v1199 = vld [vmem:[%s6 + $0x318] sm:$0xff]
  %v1200 = vld [vmem:[%s6 + $0x320] sm:$0xff]
  %v1201 = vld [vmem:[%s6 + $0x328] sm:$0xff]
  %v1202 = vld [vmem:[%s6 + $0x330] sm:$0xff]
  %v1203 = vld [vmem:[%s6 + $0x338] sm:$0xff]
  %v1204 = vld [vmem:[%s6 + $0x340] sm:$0xff]
  %v1205 = vld [vmem:[%s6 + $0x348] sm:$0xff]
  %v1206 = vld [vmem:[%s6 + $0x350] sm:$0xff]
  %v1207 = vld [vmem:[%s6 + $0x358] sm:$0xff]
  %v1208 = vld [vmem:[%s6 + $0x360] sm:$0xff]
  %v1209 = vld [vmem:[%s6 + $0x368] sm:$0xff]
  %v1210 = vld [vmem:[%s6 + $0x370] sm:$0xff]
  %v1211 = vld [vmem:[%s6 + $0x378] sm:$0xff]
  %v1212 = vld [vmem:[%s6 + $0x380] sm:$0xff]
  %v1213 = vld [vmem:[%s6 + $0x388] sm:$0xff]
  %v1214 = vld [vmem:[%s6 + $0x390] sm:$0xff]
  %v1215 = vld [vmem:[%s6 + $0x398] sm:$0xff]
  %v1216 = vld [vmem:[%s6 + $0x3a0] sm:$0xff]
  %v1217 = vld [vmem:[%s6 + $0x3a8] sm:$0xff]
  %v1218 = vld [vmem:[%s6 + $0x3b0] sm:$0xff]
  %v1219 = vld [vmem:[%s6 + $0x3b8] sm:$0xff]
  %v1220 = vld [vmem:[%s6 + $0x3c0] sm:$0xff]
  %v1221 = vld [vmem:[%s6 + $0x3c8] sm:$0xff]
  %v1222 = vld [vmem:[%s6 + $0x3d0] sm:$0xff]
  %v1223 = vld [vmem:[%s6 + $0x3d8] sm:$0xff]
  %v1224 = vld [vmem:[%s6 + $0x3e0] sm:$0xff]
  %v1225 = vld [vmem:[%s6 + $0x3e8] sm:$0xff]
  %v1226 = vld [vmem:[%s6 + $0x3f0] sm:$0xff]
  %v1227 = vld [vmem:[%s6 + $0x3f8] sm:$0xff]
  %s1228 = sld [smem:[#allocation2]]
  %v1229 = vstv %s1228
  %1230 = vmatprep.subr.mxu0 %v1101
  %1231 = vmatpush1.msra.mxu0 %v1100
  %1232 = vmatprep.subr.mxu0 %v1103
  %1233 = vmatpush1.msra.mxu0 %v1102
  %1234 = vmatprep.subr.mxu0 %v1105
  %1235 = vmatpush1.msra.mxu0 %v1104
  %1236 = vmatprep.subr.mxu0 %v1107
  %1237 = vmatpush1.msra.mxu0 %v1106
  %1238 = vmatprep.subr.mxu0 %v1109
  %1239 = vmatpush1.msra.mxu0 %v1108
  %1240 = vmatprep.subr.mxu0 %v1111
  %1241 = vmatpush1.msra.mxu0 %v1110
  %1242 = vmatprep.subr.mxu0 %v1113
  %1243 = vmatpush1.msra.mxu0 %v1112
  %1244 = vmatprep.subr.mxu0 %v1115
  %1245 = vmatpush1.msra.mxu0 %v1114
  %1246 = vmatprep.subr.mxu0 %v1117
  %1247 = vmatpush1.msra.mxu0 %v1116
  %1248 = vmatprep.subr.mxu0 %v1119
  %1249 = vmatpush1.msra.mxu0 %v1118
  %1250 = vmatprep.subr.mxu0 %v1121
  %1251 = vmatpush1.msra.mxu0 %v1120
  %1252 = vmatprep.subr.mxu0 %v1123
  %1253 = vmatpush1.msra.mxu0 %v1122
  %1254 = vmatprep.subr.mxu0 %v1125
  %1255 = vmatpush1.msra.mxu0 %v1124
  %1256 = vmatprep.subr.mxu0 %v1127
  %1257 = vmatpush1.msra.mxu0 %v1126
  %1258 = vmatprep.subr.mxu0 %v1129
  %1259 = vmatpush1.msra.mxu0 %v1128
  %1260 = vmatprep.subr.mxu0 %v1131
  %1261 = vmatpush1.msra.mxu0 %v1130
  %1262 = vmatprep.subr.mxu0 %v1133
  %1263 = vmatpush1.msra.mxu0 %v1132
  %1264 = vmatprep.subr.mxu0 %v1135
  %1265 = vmatpush1.msra.mxu0 %v1134
  %1266 = vmatprep.subr.mxu0 %v1137
  %1267 = vmatpush1.msra.mxu0 %v1136
  %1268 = vmatprep.subr.mxu0 %v1139
  %1269 = vmatpush1.msra.mxu0 %v1138
  %1270 = vmatprep.subr.mxu0 %v1141
  %1271 = vmatpush1.msra.mxu0 %v1140
  %1272 = vmatprep.subr.mxu0 %v1143
  %1273 = vmatpush1.msra.mxu0 %v1142
  %1274 = vmatprep.subr.mxu0 %v1145
  %1275 = vmatpush1.msra.mxu0 %v1144
  %1276 = vmatprep.subr.mxu0 %v1147
  %1277 = vmatpush1.msra.mxu0 %v1146
  %1278 = vmatprep.subr.mxu0 %v1149
  %1279 = vmatpush1.msra.mxu0 %v1148
  %1280 = vmatprep.subr.mxu0 %v1151
  %1281 = vmatpush1.msra.mxu0 %v1150
  %1282 = vmatprep.subr.mxu0 %v1153
  %1283 = vmatpush1.msra.mxu0 %v1152
  %1284 = vmatprep.subr.mxu0 %v1155
  %1285 = vmatpush1.msra.mxu0 %v1154
  %1286 = vmatprep.subr.mxu0 %v1157
  %1287 = vmatpush1.msra.mxu0 %v1156
  %1288 = vmatprep.subr.mxu0 %v1159
  %1289 = vmatpush1.msra.mxu0 %v1158
  %1290 = vmatprep.subr.mxu0 %v1161
  %1291 = vmatpush1.msra.mxu0 %v1160
  %1292 = vmatprep.subr.mxu0 %v1163
  %1293 = vmatpush1.msra.mxu0 %v1162
  %1294 = vmatprep.mubr.f32.mxu0 %v1097
  %1295 = vmatmul.mubr.f32.gmra.mrb[0].mxu0 %v1096
  %v1296 = vpop.f32.mrb[0].mxu0
  %v1297 = vadd.f32 %v1229, %v1296
  %v1298 = vpop.f32.mrb[0].mxu0
  %v1299 = vadd.f32 %v1229, %v1298
  %1300 = vdwg.mxu0
  %1301 = vmatprep.subr.mxu0 %v1165
  %1302 = vmatpush1.msra.mxu0 %v1164
  %1303 = vmatprep.subr.mxu0 %v1167
  %1304 = vmatpush1.msra.mxu0 %v1166
  %1305 = vmatprep.subr.mxu0 %v1169
  %1306 = vmatpush1.msra.mxu0 %v1168
  %1307 = vmatprep.subr.mxu0 %v1171
  %1308 = vmatpush1.msra.mxu0 %v1170
  %1309 = vmatprep.subr.mxu0 %v1173
  %1310 = vmatpush1.msra.mxu0 %v1172
  %1311 = vmatprep.subr.mxu0 %v1175
  %1312 = vmatpush1.msra.mxu0 %v1174
  %1313 = vmatprep.subr.mxu0 %v1177
  %1314 = vmatpush1.msra.mxu0 %v1176
  %1315 = vmatprep.subr.mxu0 %v1179
  %1316 = vmatpush1.msra.mxu0 %v1178
  %1317 = vmatprep.subr.mxu0 %v1181
  %1318 = vmatpush1.msra.mxu0 %v1180
  %1319 = vmatprep.subr.mxu0 %v1183
  %1320 = vmatpush1.msra.mxu0 %v1182
  %1321 = vmatprep.subr.mxu0 %v1185
  %1322 = vmatpush1.msra.mxu0 %v1184
  %1323 = vmatprep.subr.mxu0 %v1187
  %1324 = vmatpush1.msra.mxu0 %v1186
  %1325 = vmatprep.subr.mxu0 %v1189
  %1326 = vmatpush1.msra.mxu0 %v1188
  %1327 = vmatprep.subr.mxu0 %v1191
  %1328 = vmatpush1.msra.mxu0 %v1190
  %1329 = vmatprep.subr.mxu0 %v1193
  %1330 = vmatpush1.msra.mxu0 %v1192
  %1331 = vmatprep.subr.mxu0 %v1195
  %1332 = vmatpush1.msra.mxu0 %v1194
  %1333 = vmatprep.subr.mxu0 %v1197
  %1334 = vmatpush1.msra.mxu0 %v1196
  %1335 = vmatprep.subr.mxu0 %v1199
  %1336 = vmatpush1.msra.mxu0 %v1198
  %1337 = vmatprep.subr.mxu0 %v1201
  %1338 = vmatpush1.msra.mxu0 %v1200
  %1339 = vmatprep.subr.mxu0 %v1203
  %1340 = vmatpush1.msra.mxu0 %v1202
  %1341 = vmatprep.subr.mxu0 %v1205
  %1342 = vmatpush1.msra.mxu0 %v1204
  %1343 = vmatprep.subr.mxu0 %v1207
  %1344 = vmatpush1.msra.mxu0 %v1206
  %1345 = vmatprep.subr.mxu0 %v1209
  %1346 = vmatpush1.msra.mxu0 %v1208
  %1347 = vmatprep.subr.mxu0 %v1211
  %1348 = vmatpush1.msra.mxu0 %v1210
  %1349 = vmatprep.subr.mxu0 %v1213
  %1350 = vmatpush1.msra.mxu0 %v1212
  %1351 = vmatprep.subr.mxu0 %v1215
  %1352 = vmatpush1.msra.mxu0 %v1214
  %1353 = vmatprep.subr.mxu0 %v1217
  %1354 = vmatpush1.msra.mxu0 %v1216
  %1355 = vmatprep.subr.mxu0 %v1219
  %1356 = vmatpush1.msra.mxu0 %v1218
  %1357 = vmatprep.subr.mxu0 %v1221
  %1358 = vmatpush1.msra.mxu0 %v1220
  %1359 = vmatprep.subr.mxu0 %v1223
  %1360 = vmatpush1.msra.mxu0 %v1222
  %1361 = vmatprep.subr.mxu0 %v1225
  %1362 = vmatpush1.msra.mxu0 %v1224
  %1363 = vmatprep.subr.mxu0 %v1227
  %1364 = vmatpush1.msra.mxu0 %v1226
  %1365 = vmatprep.mubr.f32.mxu0 %v1099
  %1366 = vmatmul.mubr.f32.gmra.mrb[0].mxu0 %v1098
  %v1367 = vpop.f32.mrb[0].mxu0
  %v1368 = vadd.f32 %v1297, %v1367
  %v1369 = vpop.f32.mrb[0].mxu0
  %v1370 = vadd.f32 %v1299, %v1369
  %1371 = vdwg.mxu0
  %v1372 = vsub.f32 0.0, %v1368
  %v1373 = vsub.f32 0.0, %v1370
  %v1374 = vmin.f32 %v1372, 60.0
  %v1375 = vmin.f32 %v1373, 60.0
  %v1376 = vmul.f32 %v1374, 1.442695
  %v1377 = vpow.pop %v1376
  %v1378 = vmul.f32 %v1375, 1.442695
  %v1379 = vpow.pop %v1378
  %v1380 = vadd.f32 %v1377, 1.0
  %v1381 = vadd.f32 %v1379, 1.0
  %v1382 = vrcp.pop %v1380
  %v1383 = vrcp.pop %v1381
  %v1384 = vmul.f32 %v1380, %v1382
  %v1385 = vmul.f32 %v1381, %v1383
  %v1386 = vsub.f32 2.0, %v1384
  %v1387 = vsub.f32 2.0, %v1385
  %v1388 = vmul.f32 %v1382, %v1386
  %v1389 = vmul.f32 %v1383, %v1387
  %v1390 = vlaneseq
  %v1391 = vshrl.u32 %v1390, 7
  %v1392 = vsub.s32 0, %v1391
  %v1393 = vrot.slane %v1388, %v1392
  %v1394 = vlaneseq
  %v1395 = vshrl.u32 %v1394, 7
  %v1396 = vsub.s32 0, %v1395
  %v1397 = vrot.slane %v1389, %v1396
  %v1398 = vmul.f32 %v943, %v1393
  %v1399 = vmul.f32 %v944, %v1397
  %v1400 = vmul.f32 %v945, %v1393
  %v1401 = vmul.f32 %v946, %v1397
  %v1402 = vmul.f32 %v947, %v1393
  %v1403 = vmul.f32 %v948, %v1397
  %v1404 = vmul.f32 %v949, %v1393
  %v1405 = vmul.f32 %v950, %v1397
  %v1406 = vmul.f32 %v951, %v1393
  %v1407 = vmul.f32 %v952, %v1397
  %v1408 = vmul.f32 %v953, %v1393
  %v1409 = vmul.f32 %v954, %v1397
  %v1410 = vmul.f32 %v955, %v1393
  %v1411 = vmul.f32 %v956, %v1397
  %v1412 = vmul.f32 %v957, %v1393
  %v1413 = vmul.f32 %v958, %v1397
  %1414 = vst [vmem:[%s7] sm:$0xff] %v1398
  %1415 = vst [vmem:[%s7 + $0x8] sm:$0xff] %v1399
  %1416 = vst [vmem:[%s7 + $0x10] sm:$0xff] %v1400
  %1417 = vst [vmem:[%s7 + $0x18] sm:$0xff] %v1401
  %1418 = vst [vmem:[%s7 + $0x20] sm:$0xff] %v1402
  %1419 = vst [vmem:[%s7 + $0x28] sm:$0xff] %v1403
  %1420 = vst [vmem:[%s7 + $0x30] sm:$0xff] %v1404
  %1421 = vst [vmem:[%s7 + $0x38] sm:$0xff] %v1405
  %1422 = vst [vmem:[%s7 + $0x40] sm:$0xff] %v1406
  %1423 = vst [vmem:[%s7 + $0x48] sm:$0xff] %v1407
  %1424 = vst [vmem:[%s7 + $0x50] sm:$0xff] %v1408
  %1425 = vst [vmem:[%s7 + $0x58] sm:$0xff] %v1409
  %1426 = vst [vmem:[%s7 + $0x60] sm:$0xff] %v1410
  %1427 = vst [vmem:[%s7 + $0x68] sm:$0xff] %v1411
  %1428 = vst [vmem:[%s7 + $0x70] sm:$0xff] %v1412
  %1429 = vst [vmem:[%s7 + $0x78] sm:$0xff] %v1413
  %v1430 = vlaneseq
  %v1431 = vshrl.u32 %v1430, 7
  %v1432 = vsub.s32 1, %v1431
  %v1433 = vrot.slane %v1388, %v1432
  %v1434 = vlaneseq
  %v1435 = vshrl.u32 %v1434, 7
  %v1436 = vsub.s32 1, %v1435
  %v1437 = vrot.slane %v1389, %v1436
  %v1438 = vmul.f32 %v959, %v1433
  %v1439 = vmul.f32 %v960, %v1437
  %v1440 = vmul.f32 %v961, %v1433
  %v1441 = vmul.f32 %v962, %v1437
  %v1442 = vmul.f32 %v963, %v1433
  %v1443 = vmul.f32 %v964, %v1437
  %v1444 = vmul.f32 %v965, %v1433
  %v1445 = vmul.f32 %v966, %v1437
  %v1446 = vmul.f32 %v967, %v1433
  %v1447 = vmul.f32 %v968, %v1437
  %v1448 = vmul.f32 %v969, %v1433
  %v1449 = vmul.f32 %v970, %v1437
  %v1450 = vmul.f32 %v971, %v1433
  %v1451 = vmul.f32 %v972, %v1437
  %v1452 = vmul.f32 %v973, %v1433
  %v1453 = vmul.f32 %v974, %v1437
  %1454 = vst [vmem:[%s7 + $0x80] sm:$0xff] %v1438
  %1455 = vst [vmem:[%s7 + $0x88] sm:$0xff] %v1439
  %1456 = vst [vmem:[%s7 + $0x90] sm:$0xff] %v1440
  %1457 = vst [vmem:[%s7 + $0x98] sm:$0xff] %v1441
  %1458 = vst [vmem:[%s7 + $0xa0] sm:$0xff] %v1442
  %1459 = vst [vmem:[%s7 + $0xa8] sm:$0xff] %v1443
  %1460 = vst [vmem:[%s7 + $0xb0] sm:$0xff] %v1444
  %1461 = vst [vmem:[%s7 + $0xb8] sm:$0xff] %v1445
  %1462 = vst [vmem:[%s7 + $0xc0] sm:$0xff] %v1446
  %1463 = vst [vmem:[%s7 + $0xc8] sm:$0xff] %v1447
  %1464 = vst [vmem:[%s7 + $0xd0] sm:$0xff] %v1448
  %1465 = vst [vmem:[%s7 + $0xd8] sm:$0xff] %v1449
  %1466 = vst [vmem:[%s7 + $0xe0] sm:$0xff] %v1450
  %1467 = vst [vmem:[%s7 + $0xe8] sm:$0xff] %v1451
  %1468 = vst [vmem:[%s7 + $0xf0] sm:$0xff] %v1452
  %1469 = vst [vmem:[%s7 + $0xf8] sm:$0xff] %v1453
  // Predicated region
  $region30: #{cbam_forward.1} parent=0 // pred_check
    _
  $region31: #{cbam_forward.1} parent=0 // pred_check_branch
    %1471 = sbr.rel (0) target = $region33
  $region32: #{cbam_forward.1} parent=0 // pred_region
    _
  $region33: #{cbam_forward.1} parent=0 // pred_fallthru
    _
  // Predicated region
  $region34: #{cbam_forward.1} parent=0 // pred_check
    _
  $region35: #{cbam_forward.1} parent=0 // pred_check_branch
    %1473 = sbr.rel (0) target = $region37
  $region36: #{cbam_forward.1} parent=0 // pred_region
    _
  $region37: #{cbam_forward.1} parent=0 // pred_fallthru
    _

</llo_original>
